<compile_context>
chip_gen: v5e
topology: v5e:2x2
jax: 0.10.0
libtpu: 0.0.40
codegen_flags: <defaults>
</compile_context>

<pallas_src>
import numpy as np
import jax
import jax.numpy as jnp
from jax.experimental import pallas as pl
from jax.experimental.pallas import tpu as pltpu

EPS = 1e-12


def make_block_kernel(N, H, S, T, K, L, dilations, eps, Bt, KH_pad):
    """Fused kernel for L stacked ResidualBlock1d layers; Bt batch samples per grid step."""
    TL = Bt * T              # fused lane width (Bt samples back-to-back along lanes)
    KH = K * H
    pow2_T = (T & (T - 1)) == 0

    def kernel(x_ref, wb_ref, vec_ref, wh_ref, bh_ref, xout_ref, skipout_ref):
        x = x_ref[...]                                        # (N, TL) f32 residual carrier
        skip = jnp.zeros((S, TL), jnp.float32)

        # Per-sample lane position (lane % T); loop-invariant, computed once.
        lane = jax.lax.broadcasted_iota(jnp.int32, (1, TL), 1)
        lane_mod = (lane & (T - 1)) if pow2_T else (lane % T)
        inv_cum_num = 1.0 / ((lane_mod + 1).astype(jnp.float32) * jnp.float32(H))  # (1, TL)

        # Zero rows padding the tap-stack contraction up to KH_pad (matches the zero
        # weight columns packed host-side). Hoisted: JAX does not CSE broadcasts.
        if KH_pad > KH:
            pad_rows = jnp.zeros((KH_pad - KH, TL), jnp.bfloat16)

        for l in range(L):
            d = dilations[l]
            vec_l = vec_ref[l]                                # (H, 3) f32
            bb, gamma, beta = vec_l[:, 0:1], vec_l[:, 1:2], vec_l[:, 2:3]

            # ---- 1x1 bottleneck conv: bf16 MXU, f32 accumulate ----
            h = jnp.dot(wb_ref[l], x.astype(jnp.bfloat16),
                        preferred_element_type=jnp.float32) + bb          # (H, TL) f32

            # ---- cumulative layer norm (cLN): in-register Hillis-Steele prefix scan ----
            cum = jnp.concatenate(
                [jnp.sum(h, axis=0, keepdims=True),
                 jnp.sum(h * h, axis=0, keepdims=True)], axis=0)          # (2, TL) f32
            shift = 1
            while shift < T:                                  # log2(T) steps, all in vregs
                rolled = pltpu.roll(cum, shift, axis=1)
                # lane_mod mask keeps each sample's scan independent (zeros flow in at
                # every per-sample start), so lane-fused batching stays causal.
                cum = cum + jnp.where(lane_mod < shift, 0.0, rolled)
                shift *= 2
            cum_mean = cum[0:1] * inv_cum_num                             # (1, TL)
            cum_var = cum[1:2] * inv_cum_num - cum_mean * cum_mean
            # PyTorch cLN: sqrt(var + eps); clamp only guards fp-negative var.
            inv_std = jax.lax.rsqrt(jnp.maximum(cum_var, 0.0) + eps)      # (1, TL)
            scale = gamma * inv_std                                       # (H, TL)
            shift_b = beta - cum_mean * scale                             # (H, TL)
            h = h * scale + shift_b                                       # single mul+add

            # ---- causal dilated conv: K taps + out/skip heads in ONE fused matmul ----
            # tap k = h shifted right by s=(K-1-k)*d with zeros at each sample start
            # (== F.pad((K-1)*d, 0) followed by the dilated conv, stride=1).
            taps = []
            for k in range(K):
                s = (K - 1 - k) * d
                if s == 0:
                    taps.append(h.astype(jnp.bfloat16))
                else:
                    rolled = pltpu.roll(h, s, axis=1)
                    taps.append(jnp.where(lane_mod < s, 0.0, rolled).astype(jnp.bfloat16))
            if KH_pad > KH:
                taps.append(pad_rows)
            tap_stack = jnp.concatenate(taps, axis=0)                     # (KH_pad, TL) bf16

            heads = jnp.dot(wh_ref[l], tap_stack,
                            preferred_element_type=jnp.float32) + bh_ref[l]  # (N+S, TL) f32

            x = heads[:N] + x            # residual add (output head), f32
            skip = skip + heads[N:]      # running skip sum, f32

        xout_ref[...] = x
        skipout_ref[...] = skip

    return kernel


def time_dilated_conv_block(x, layer_params, kernel_size=3, eps=EPS, batch_per_step=1):
    """Forward of a stack of ResidualBlock1d layers (dilated, causal, stride=1).

    Returns (x_after_last_layer, sum_of_skip_outputs). A single ResidualBlock1d is L=1.
    """
    B, N, T = x.shape
    L = len(layer_params)
    K = kernel_size
    H = layer_params[0]["wb"].shape[0]
    S = layer_params[0]["wskip"].shape[1]
    NS = N + S
    dilations = tuple(2 ** i for i in range(L))
    assert (K - 1) * max(dilations) < T

    Bt = batch_per_step
    assert B % Bt == 0, "batch must be divisible by batch_per_step"
    G = B // Bt
    TL = Bt * T
    KH = K * H
    KH_pad = ((KH + 127) // 128) * 128      # lane-dense head-weight contraction

    f32, bf16 = jnp.float32, jnp.bfloat16

    # ---- pack / fuse weights on the host side (weights cast to bf16 for the MXU) ----
    wb = jnp.stack([p["wb"] for p in layer_params]).astype(bf16)                  # (L, H, N)
    vec = jnp.stack([
        jnp.concatenate([p["bb"], p["gamma"], p["beta"]], axis=1)
        for p in layer_params]).astype(f32)                                       # (L, H, 3)
    # Fused output+skip heads with K taps flattened into the contraction dim:
    #   wh[l, c, k*H + j] = weight of tap k, hidden channel j, fused output channel c
    wh_core = jnp.stack([
        jnp.concatenate([p["wout"], p["wskip"]], axis=1)         # (K, N+S, H)
           .transpose(1, 0, 2).reshape(NS, KH)
        for p in layer_params]).astype(f32)                                       # (L, NS, KH)
    wh = jnp.zeros((L, NS, KH_pad), f32).at[:, :, :KH].set(wh_core).astype(bf16)
    bh = jnp.stack([
        jnp.concatenate([p["bout"], p["bskip"]], axis=0)
        for p in layer_params]).astype(f32)                                       # (L, NS, 1)

    # Lane-fuse Bt samples per grid step: (B, N, T) -> (N, B*T), sample b at lanes [b*T,(b+1)*T).
    x2 = x.astype(f32).transpose(1, 0, 2).reshape(N, B * T)

    kernel = make_block_kernel(N, H, S, T, K, L, dilations, eps, Bt, KH_pad)

    in_specs = [
        pl.BlockSpec((N, TL), lambda g: (0, g)),               # x (Bt samples / step)
        pl.BlockSpec((L, H, N), lambda g: (0, 0, 0)),          # bottleneck weights (bf16)
        pl.BlockSpec((L, H, 3), lambda g: (0, 0, 0)),          # [bb | gamma | beta]
        pl.BlockSpec((L, NS, KH_pad), lambda g: (0, 0, 0)),    # fused head weights (bf16)
        pl.BlockSpec((L, NS, 1), lambda g: (0, 0, 0)),         # fused head biases
    ]
    out_specs = (
        pl.BlockSpec((N, TL), lambda g: (0, g)),
        pl.BlockSpec((S, TL), lambda g: (0, g)),
    )
    out_shape = (
        jax.ShapeDtypeStruct((N, B * T), f32),
        jax.ShapeDtypeStruct((S, B * T), f32),
    )
    out2, skip2 = pl.pallas_call(
        kernel,
        out_shape=out_shape,
        grid_spec=pltpu.PrefetchScalarGridSpec(
            num_scalar_prefetch=0,
            grid=(G,),
            in_specs=in_specs,
            out_specs=out_specs,
        ),
        compiler_params=pltpu.CompilerParams(
            dimension_semantics=("parallel",)),                # batch steps independent
    )(x2, wb, vec, wh, bh)
    # TODO(synk): for very long T at real model sizes (v7x 64 MiB VMEM), add a time-tile
    # grid axis ("arbitrary", last) with carried cLN running sum/sumsq in SMEM and set
    # vmem_limit_bytes explicitly.

    out = out2.reshape(N, B, T).transpose(1, 0, 2)
    skip = skip2.reshape(S, B, T).transpose(1, 0, 2)
    return out, skip


# ------------------------- pure-JAX reference (for checking) -------------------------
def reference(x, layer_params, K, eps):
    B, N, T = x.shape
    S = layer_params[0]["wskip"].shape[1]
    skip = jnp.zeros((B, S, T), jnp.float32)
    for idx, p in enumerate(layer_params):
        d = 2 ** idx
        H = p["wb"].shape[0]
        h = jnp.einsum("hn,bnt->bht", p["wb"], x) + p["bb"][None]
        step_sum = h.sum(axis=1)
        step_sq = (h * h).sum(axis=1)
        cum_sum = jnp.cumsum(step_sum, axis=1)
        cum_sq = jnp.cumsum(step_sq, axis=1)
        cum_num = H * jnp.arange(1, T + 1, dtype=jnp.float32)
        cum_mean = cum_sum / cum_num
        cum_var = cum_sq / cum_num - cum_mean ** 2
        cum_std = jnp.sqrt(jnp.maximum(cum_var, 0.0) + eps)   # cLN: eps inside sqrt
        h = (h - cum_mean[:, None, :]) / cum_std[:, None, :] * p["gamma"][None] + p["beta"][None]
        pad = (K - 1) * d
        hp = jnp.pad(h, ((0, 0), (0, 0), (pad, 0)))
        out = jnp.zeros((B, N, T), jnp.float32) + p["bout"][None]
        skp = jnp.zeros((B, S, T), jnp.float32) + p["bskip"][None]
        for k in range(K):
            sl = hp[:, :, k * d: k * d + T]
            out = out + jnp.einsum("nh,bht->bnt", p["wout"][k], sl)
            skp = skp + jnp.einsum("sh,bht->bst", p["wskip"][k], sl)
        x = out + x
        skip = skip + skp
    return x, skip


if __name__ == "__main__":
    # Small shapes; T=128 keeps the time axis lane-dense, B=4 with 2 samples per grid
    # step gives an even parallel grid (v7x megacore) and a 256-wide MXU lane dim.
    B, N, H, S, T, K, L = 4, 16, 32, 16, 128, 3, 3

    key = jax.random.PRNGKey(0)
    layer_params = []
    for _ in range(L):
        key, *ks = jax.random.split(key, 7)
        layer_params.append(dict(
            wb=0.1 * jax.random.normal(ks[0], (H, N), jnp.float32),       # bottleneck 1x1 conv
            bb=0.1 * jax.random.normal(ks[1], (H, 1), jnp.float32),
            gamma=jnp.ones((H, 1), jnp.float32),                          # cLN params (PyTorch init)
            beta=jnp.zeros((H, 1), jnp.float32),
            wout=0.1 * jax.random.normal(ks[2], (K, N, H), jnp.float32),  # (K, C_out, C_in)
            bout=0.1 * jax.random.normal(ks[3], (N, 1), jnp.float32),
            wskip=0.1 * jax.random.normal(ks[4], (K, S, H), jnp.float32),
            bskip=0.1 * jax.random.normal(ks[5], (S, 1), jnp.float32),
        ))
    key, kx = jax.random.split(key)
    x = jax.random.normal(kx, (B, N, T), jnp.float32)

    out, skip = time_dilated_conv_block(x, layer_params, kernel_size=K, eps=EPS,
                                        batch_per_step=2)
    jax.block_until_ready((out, skip))

    ref_out, ref_skip = reference(x, layer_params, K, EPS)
    # Tolerances account for bf16 matmul inputs (f32 accumulation, f32 cLN).
    assert np.allclose(np.asarray(out), np.asarray(ref_out), atol=1e-1, rtol=5e-2)
    assert np.allclose(np.asarray(skip), np.asarray(ref_skip), atol=1e-1, rtol=5e-2)

    print("KERNEL_OK")
</pallas_src>

<mosaic_0001>
module attributes {stable_mosaic.version = 11 : i64} {
  func.func @kernel(%arg0: i32, %arg1: memref<16x256xf32, #tpu.memory_space<vmem>>, %arg2: memref<3x32x16xbf16, #tpu.memory_space<vmem>>, %arg3: memref<3x32x3xf32, #tpu.memory_space<vmem>>, %arg4: memref<3x32x128xbf16, #tpu.memory_space<vmem>>, %arg5: memref<3x32x1xf32, #tpu.memory_space<vmem>>, %arg6: memref<16x256xf32, #tpu.memory_space<vmem>>, %arg7: memref<16x256xf32, #tpu.memory_space<vmem>>) attributes {dimension_semantics = [#tpu.dimension_semantics<parallel>], iteration_bounds = array<i64: 2>, scalar_prefetch = 0 : i64, scratch_operands = 0 : i64, tpu.core_type = #tpu.core_type<tc>, window_params = [{transform_indices = @transform_0, window_bounds = array<i64: 16, 256>}, {pipeline_mode = #tpu.pipeline_mode<synchronous>, transform_indices = @transform_1, window_bounds = array<i64: 3, 32, 16>}, {pipeline_mode = #tpu.pipeline_mode<synchronous>, transform_indices = @transform_2, window_bounds = array<i64: 3, 32, 3>}, {pipeline_mode = #tpu.pipeline_mode<synchronous>, transform_indices = @transform_3, window_bounds = array<i64: 3, 32, 128>}, {pipeline_mode = #tpu.pipeline_mode<synchronous>, transform_indices = @transform_4, window_bounds = array<i64: 3, 32, 1>}, {transform_indices = @transform_5, window_bounds = array<i64: 16, 256>}, {transform_indices = @transform_6, window_bounds = array<i64: 16, 256>}]} {
    %c0 = arith.constant 0 : index
    %c0_0 = arith.constant 0 : index
    %0 = vector.load %arg1[%c0, %c0_0] : memref<16x256xf32, #tpu.memory_space<vmem>>, vector<16x256xf32>
    %cst = arith.constant 0.000000e+00 : f32
    %1 = vector.broadcast %cst : f32 to vector<16x256xf32>
    %2 = tpu.iota {dimensions = array<i32: 1>} : vector<1x256xi32>
    %c127_i32 = arith.constant 127 : i32
    %3 = vector.broadcast %c127_i32 : i32 to vector<1x256xi32>
    %4 = arith.andi %2, %3 : vector<1x256xi32>
    %c1_i32 = arith.constant 1 : i32
    %5 = vector.broadcast %c1_i32 : i32 to vector<1x256xi32>
    %6 = arith.addi %4, %5 : vector<1x256xi32>
    %7 = arith.sitofp %6 : vector<1x256xi32> to vector<1x256xf32>
    %cst_1 = arith.constant 3.200000e+01 : f32
    %8 = vector.broadcast %cst_1 : f32 to vector<1x256xf32>
    %9 = arith.mulf %7, %8 : vector<1x256xf32>
    %cst_2 = arith.constant 1.000000e+00 : f32
    %10 = vector.broadcast %cst_2 : f32 to vector<1x256xf32>
    %11 = arith.divf %10, %9 : vector<1x256xf32>
    %cst_3 = arith.constant 0.000000e+00 : bf16
    %12 = vector.broadcast %cst_3 : bf16 to vector<32x256xbf16>
    %c0_4 = arith.constant 0 : index
    %c0_5 = arith.constant 0 : index
    %c0_6 = arith.constant 0 : index
    %13 = vector.load %arg3[%c0_4, %c0_5, %c0_6] : memref<3x32x3xf32, #tpu.memory_space<vmem>>, vector<1x32x3xf32>
    %14 = vector.shape_cast %13 : vector<1x32x3xf32> to vector<32x3xf32>
    %15 = vector.extract_strided_slice %14 {offsets = [0, 0], sizes = [32, 1], strides = [1, 1]} : vector<32x3xf32> to vector<32x1xf32>
    %16 = vector.extract_strided_slice %14 {offsets = [0, 1], sizes = [32, 1], strides = [1, 1]} : vector<32x3xf32> to vector<32x1xf32>
    %17 = vector.extract_strided_slice %14 {offsets = [0, 2], sizes = [32, 1], strides = [1, 1]} : vector<32x3xf32> to vector<32x1xf32>
    %c0_7 = arith.constant 0 : index
    %c0_8 = arith.constant 0 : index
    %c0_9 = arith.constant 0 : index
    %18 = vector.load %arg2[%c0_7, %c0_8, %c0_9] : memref<3x32x16xbf16, #tpu.memory_space<vmem>>, vector<1x32x16xbf16>
    %19 = vector.shape_cast %18 : vector<1x32x16xbf16> to vector<32x16xbf16>
    %20 = arith.truncf %0 : vector<16x256xf32> to vector<16x256xbf16>
    %cst_10 = arith.constant dense<0.000000e+00> : vector<32x256xf32>
    %21 = tpu.matmul %19, %20, %cst_10 {dimension_numbers = #tpu.dot_dimension_numbers<[1], [0], [0], [1], [0, 0, 1, 1], [], []>} : vector<32x16xbf16>, vector<16x256xbf16>, vector<32x256xf32> -> vector<32x256xf32>
    %22 = vector.broadcast %15 : vector<32x1xf32> to vector<32x256xf32>
    %23 = arith.addf %21, %22 : vector<32x256xf32>
    %cst_11 = arith.constant dense<0.000000e+00> : vector<256xf32>
    %24 = vector.multi_reduction <add>, %23, %cst_11 [0] : vector<32x256xf32> to vector<256xf32>
    %25 = vector.shape_cast %24 : vector<256xf32> to vector<1x256xf32>
    %26 = arith.mulf %23, %23 : vector<32x256xf32>
    %cst_12 = arith.constant dense<0.000000e+00> : vector<256xf32>
    %27 = vector.multi_reduction <add>, %26, %cst_12 [0] : vector<32x256xf32> to vector<256xf32>
    %28 = vector.shape_cast %27 : vector<256xf32> to vector<1x256xf32>
    %29 = tpu.concatenate %25, %28 in 0 : vector<1x256xf32>, vector<1x256xf32> -> vector<2x256xf32>
    %c1_i32_13 = arith.constant 1 : i32
    %30 = tpu.dynamic_rotate %29 by %c1_i32_13 dim 1 : vector<2x256xf32>, i32 -> vector<2x256xf32>
    %c1_i32_14 = arith.constant 1 : i32
    %31 = vector.broadcast %c1_i32_14 : i32 to vector<1x256xi32>
    %32 = arith.cmpi slt, %4, %31 : vector<1x256xi32>
    %cst_15 = arith.constant 0.000000e+00 : f32
    %33 = vector.shape_cast %32 : vector<1x256xi1> to vector<1x256xi1>
    %34 = vector.broadcast %33 : vector<1x256xi1> to vector<2x256xi1>
    %35 = vector.broadcast %cst_15 : f32 to vector<2x256xf32>
    %36 = arith.select %34, %35, %30 : vector<2x256xi1>, vector<2x256xf32>
    %37 = arith.addf %29, %36 : vector<2x256xf32>
    %c2_i32 = arith.constant 2 : i32
    %38 = tpu.dynamic_rotate %37 by %c2_i32 dim 1 : vector<2x256xf32>, i32 -> vector<2x256xf32>
    %c2_i32_16 = arith.constant 2 : i32
    %39 = vector.broadcast %c2_i32_16 : i32 to vector<1x256xi32>
    %40 = arith.cmpi slt, %4, %39 : vector<1x256xi32>
    %cst_17 = arith.constant 0.000000e+00 : f32
    %41 = vector.shape_cast %40 : vector<1x256xi1> to vector<1x256xi1>
    %42 = vector.broadcast %41 : vector<1x256xi1> to vector<2x256xi1>
    %43 = vector.broadcast %cst_17 : f32 to vector<2x256xf32>
    %44 = arith.select %42, %43, %38 : vector<2x256xi1>, vector<2x256xf32>
    %45 = arith.addf %37, %44 : vector<2x256xf32>
    %c4_i32 = arith.constant 4 : i32
    %46 = tpu.dynamic_rotate %45 by %c4_i32 dim 1 : vector<2x256xf32>, i32 -> vector<2x256xf32>
    %c4_i32_18 = arith.constant 4 : i32
    %47 = vector.broadcast %c4_i32_18 : i32 to vector<1x256xi32>
    %48 = arith.cmpi slt, %4, %47 : vector<1x256xi32>
    %cst_19 = arith.constant 0.000000e+00 : f32
    %49 = vector.shape_cast %48 : vector<1x256xi1> to vector<1x256xi1>
    %50 = vector.broadcast %49 : vector<1x256xi1> to vector<2x256xi1>
    %51 = vector.broadcast %cst_19 : f32 to vector<2x256xf32>
    %52 = arith.select %50, %51, %46 : vector<2x256xi1>, vector<2x256xf32>
    %53 = arith.addf %45, %52 : vector<2x256xf32>
    %c8_i32 = arith.constant 8 : i32
    %54 = tpu.dynamic_rotate %53 by %c8_i32 dim 1 : vector<2x256xf32>, i32 -> vector<2x256xf32>
    %c8_i32_20 = arith.constant 8 : i32
    %55 = vector.broadcast %c8_i32_20 : i32 to vector<1x256xi32>
    %56 = arith.cmpi slt, %4, %55 : vector<1x256xi32>
    %cst_21 = arith.constant 0.000000e+00 : f32
    %57 = vector.shape_cast %56 : vector<1x256xi1> to vector<1x256xi1>
    %58 = vector.broadcast %57 : vector<1x256xi1> to vector<2x256xi1>
    %59 = vector.broadcast %cst_21 : f32 to vector<2x256xf32>
    %60 = arith.select %58, %59, %54 : vector<2x256xi1>, vector<2x256xf32>
    %61 = arith.addf %53, %60 : vector<2x256xf32>
    %c16_i32 = arith.constant 16 : i32
    %62 = tpu.dynamic_rotate %61 by %c16_i32 dim 1 : vector<2x256xf32>, i32 -> vector<2x256xf32>
    %c16_i32_22 = arith.constant 16 : i32
    %63 = vector.broadcast %c16_i32_22 : i32 to vector<1x256xi32>
    %64 = arith.cmpi slt, %4, %63 : vector<1x256xi32>
    %cst_23 = arith.constant 0.000000e+00 : f32
    %65 = vector.shape_cast %64 : vector<1x256xi1> to vector<1x256xi1>
    %66 = vector.broadcast %65 : vector<1x256xi1> to vector<2x256xi1>
    %67 = vector.broadcast %cst_23 : f32 to vector<2x256xf32>
    %68 = arith.select %66, %67, %62 : vector<2x256xi1>, vector<2x256xf32>
    %69 = arith.addf %61, %68 : vector<2x256xf32>
    %c32_i32 = arith.constant 32 : i32
    %70 = tpu.dynamic_rotate %69 by %c32_i32 dim 1 : vector<2x256xf32>, i32 -> vector<2x256xf32>
    %c32_i32_24 = arith.constant 32 : i32
    %71 = vector.broadcast %c32_i32_24 : i32 to vector<1x256xi32>
    %72 = arith.cmpi slt, %4, %71 : vector<1x256xi32>
    %cst_25 = arith.constant 0.000000e+00 : f32
    %73 = vector.shape_cast %72 : vector<1x256xi1> to vector<1x256xi1>
    %74 = vector.broadcast %73 : vector<1x256xi1> to vector<2x256xi1>
    %75 = vector.broadcast %cst_25 : f32 to vector<2x256xf32>
    %76 = arith.select %74, %75, %70 : vector<2x256xi1>, vector<2x256xf32>
    %77 = arith.addf %69, %76 : vector<2x256xf32>
    %c64_i32 = arith.constant 64 : i32
    %78 = tpu.dynamic_rotate %77 by %c64_i32 dim 1 : vector<2x256xf32>, i32 -> vector<2x256xf32>
    %c64_i32_26 = arith.constant 64 : i32
    %79 = vector.broadcast %c64_i32_26 : i32 to vector<1x256xi32>
    %80 = arith.cmpi slt, %4, %79 : vector<1x256xi32>
    %cst_27 = arith.constant 0.000000e+00 : f32
    %81 = vector.shape_cast %80 : vector<1x256xi1> to vector<1x256xi1>
    %82 = vector.broadcast %81 : vector<1x256xi1> to vector<2x256xi1>
    %83 = vector.broadcast %cst_27 : f32 to vector<2x256xf32>
    %84 = arith.select %82, %83, %78 : vector<2x256xi1>, vector<2x256xf32>
    %85 = arith.addf %77, %84 : vector<2x256xf32>
    %86 = vector.extract_strided_slice %85 {offsets = [0, 0], sizes = [1, 256], strides = [1, 1]} : vector<2x256xf32> to vector<1x256xf32>
    %87 = arith.mulf %86, %11 : vector<1x256xf32>
    %88 = vector.extract_strided_slice %85 {offsets = [1, 0], sizes = [1, 256], strides = [1, 1]} : vector<2x256xf32> to vector<1x256xf32>
    %89 = arith.mulf %88, %11 : vector<1x256xf32>
    %90 = arith.mulf %87, %87 : vector<1x256xf32>
    %91 = arith.subf %89, %90 : vector<1x256xf32>
    %cst_28 = arith.constant 0.000000e+00 : f32
    %92 = vector.broadcast %cst_28 : f32 to vector<1x256xf32>
    %93 = arith.maximumf %91, %92 : vector<1x256xf32>
    %cst_29 = arith.constant 9.99999996E-13 : f32
    %94 = vector.broadcast %cst_29 : f32 to vector<1x256xf32>
    %95 = arith.addf %93, %94 : vector<1x256xf32>
    %96 = math.rsqrt %95 : vector<1x256xf32>
    %97 = vector.broadcast %16 : vector<32x1xf32> to vector<32x256xf32>
    %98 = vector.broadcast %96 : vector<1x256xf32> to vector<32x256xf32>
    %99 = arith.mulf %97, %98 : vector<32x256xf32>
    %100 = vector.broadcast %87 : vector<1x256xf32> to vector<32x256xf32>
    %101 = arith.mulf %100, %99 : vector<32x256xf32>
    %102 = vector.broadcast %17 : vector<32x1xf32> to vector<32x256xf32>
    %103 = arith.subf %102, %101 : vector<32x256xf32>
    %104 = arith.mulf %23, %99 : vector<32x256xf32>
    %105 = arith.addf %104, %103 : vector<32x256xf32>
    %c2_i32_30 = arith.constant 2 : i32
    %106 = tpu.dynamic_rotate %105 by %c2_i32_30 dim 1 : vector<32x256xf32>, i32 -> vector<32x256xf32>
    %c2_i32_31 = arith.constant 2 : i32
    %107 = vector.broadcast %c2_i32_31 : i32 to vector<1x256xi32>
    %108 = arith.cmpi slt, %4, %107 : vector<1x256xi32>
    %cst_32 = arith.constant 0.000000e+00 : f32
    %109 = vector.shape_cast %108 : vector<1x256xi1> to vector<1x256xi1>
    %110 = vector.broadcast %109 : vector<1x256xi1> to vector<32x256xi1>
    %111 = vector.broadcast %cst_32 : f32 to vector<32x256xf32>
    %112 = arith.select %110, %111, %106 : vector<32x256xi1>, vector<32x256xf32>
    %113 = arith.truncf %112 : vector<32x256xf32> to vector<32x256xbf16>
    %c1_i32_33 = arith.constant 1 : i32
    %114 = tpu.dynamic_rotate %105 by %c1_i32_33 dim 1 : vector<32x256xf32>, i32 -> vector<32x256xf32>
    %c1_i32_34 = arith.constant 1 : i32
    %115 = vector.broadcast %c1_i32_34 : i32 to vector<1x256xi32>
    %116 = arith.cmpi slt, %4, %115 : vector<1x256xi32>
    %cst_35 = arith.constant 0.000000e+00 : f32
    %117 = vector.shape_cast %116 : vector<1x256xi1> to vector<1x256xi1>
    %118 = vector.broadcast %117 : vector<1x256xi1> to vector<32x256xi1>
    %119 = vector.broadcast %cst_35 : f32 to vector<32x256xf32>
    %120 = arith.select %118, %119, %114 : vector<32x256xi1>, vector<32x256xf32>
    %121 = arith.truncf %120 : vector<32x256xf32> to vector<32x256xbf16>
    %122 = arith.truncf %105 : vector<32x256xf32> to vector<32x256xbf16>
    %123 = tpu.concatenate %113, %121, %122, %12 in 0 : vector<32x256xbf16>, vector<32x256xbf16>, vector<32x256xbf16>, vector<32x256xbf16> -> vector<128x256xbf16>
    %c0_36 = arith.constant 0 : index
    %c0_37 = arith.constant 0 : index
    %c0_38 = arith.constant 0 : index
    %124 = vector.load %arg4[%c0_36, %c0_37, %c0_38] : memref<3x32x128xbf16, #tpu.memory_space<vmem>>, vector<1x32x128xbf16>
    %125 = vector.shape_cast %124 : vector<1x32x128xbf16> to vector<32x128xbf16>
    %cst_39 = arith.constant dense<0.000000e+00> : vector<32x256xf32>
    %126 = tpu.matmul %125, %123, %cst_39 {dimension_numbers = #tpu.dot_dimension_numbers<[1], [0], [0], [1], [0, 0, 1, 1], [], []>} : vector<32x128xbf16>, vector<128x256xbf16>, vector<32x256xf32> -> vector<32x256xf32>
    %c0_40 = arith.constant 0 : index
    %c0_41 = arith.constant 0 : index
    %c0_42 = arith.constant 0 : index
    %127 = vector.load %arg5[%c0_40, %c0_41, %c0_42] : memref<3x32x1xf32, #tpu.memory_space<vmem>>, vector<1x32x1xf32>
    %128 = vector.shape_cast %127 : vector<1x32x1xf32> to vector<32x1xf32>
    %129 = vector.broadcast %128 : vector<32x1xf32> to vector<32x256xf32>
    %130 = arith.addf %126, %129 : vector<32x256xf32>
    %131 = vector.extract_strided_slice %130 {offsets = [0, 0], sizes = [16, 256], strides = [1, 1]} : vector<32x256xf32> to vector<16x256xf32>
    %132 = arith.addf %131, %0 : vector<16x256xf32>
    %133 = vector.extract_strided_slice %130 {offsets = [16, 0], sizes = [16, 256], strides = [1, 1]} : vector<32x256xf32> to vector<16x256xf32>
    %134 = arith.addf %1, %133 : vector<16x256xf32>
    %c1 = arith.constant 1 : index
    %c0_43 = arith.constant 0 : index
    %c0_44 = arith.constant 0 : index
    %135 = vector.load %arg3[%c1, %c0_43, %c0_44] : memref<3x32x3xf32, #tpu.memory_space<vmem>>, vector<1x32x3xf32>
    %136 = vector.shape_cast %135 : vector<1x32x3xf32> to vector<32x3xf32>
    %137 = vector.extract_strided_slice %136 {offsets = [0, 0], sizes = [32, 1], strides = [1, 1]} : vector<32x3xf32> to vector<32x1xf32>
    %138 = vector.extract_strided_slice %136 {offsets = [0, 1], sizes = [32, 1], strides = [1, 1]} : vector<32x3xf32> to vector<32x1xf32>
    %139 = vector.extract_strided_slice %136 {offsets = [0, 2], sizes = [32, 1], strides = [1, 1]} : vector<32x3xf32> to vector<32x1xf32>
    %c1_45 = arith.constant 1 : index
    %c0_46 = arith.constant 0 : index
    %c0_47 = arith.constant 0 : index
    %140 = vector.load %arg2[%c1_45, %c0_46, %c0_47] : memref<3x32x16xbf16, #tpu.memory_space<vmem>>, vector<1x32x16xbf16>
    %141 = vector.shape_cast %140 : vector<1x32x16xbf16> to vector<32x16xbf16>
    %142 = arith.truncf %132 : vector<16x256xf32> to vector<16x256xbf16>
    %cst_48 = arith.constant dense<0.000000e+00> : vector<32x256xf32>
    %143 = tpu.matmul %141, %142, %cst_48 {dimension_numbers = #tpu.dot_dimension_numbers<[1], [0], [0], [1], [0, 0, 1, 1], [], []>} : vector<32x16xbf16>, vector<16x256xbf16>, vector<32x256xf32> -> vector<32x256xf32>
    %144 = vector.broadcast %137 : vector<32x1xf32> to vector<32x256xf32>
    %145 = arith.addf %143, %144 : vector<32x256xf32>
    %cst_49 = arith.constant dense<0.000000e+00> : vector<256xf32>
    %146 = vector.multi_reduction <add>, %145, %cst_49 [0] : vector<32x256xf32> to vector<256xf32>
    %147 = vector.shape_cast %146 : vector<256xf32> to vector<1x256xf32>
    %148 = arith.mulf %145, %145 : vector<32x256xf32>
    %cst_50 = arith.constant dense<0.000000e+00> : vector<256xf32>
    %149 = vector.multi_reduction <add>, %148, %cst_50 [0] : vector<32x256xf32> to vector<256xf32>
    %150 = vector.shape_cast %149 : vector<256xf32> to vector<1x256xf32>
    %151 = tpu.concatenate %147, %150 in 0 : vector<1x256xf32>, vector<1x256xf32> -> vector<2x256xf32>
    %c1_i32_51 = arith.constant 1 : i32
    %152 = tpu.dynamic_rotate %151 by %c1_i32_51 dim 1 : vector<2x256xf32>, i32 -> vector<2x256xf32>
    %c1_i32_52 = arith.constant 1 : i32
    %153 = vector.broadcast %c1_i32_52 : i32 to vector<1x256xi32>
    %154 = arith.cmpi slt, %4, %153 : vector<1x256xi32>
    %cst_53 = arith.constant 0.000000e+00 : f32
    %155 = vector.shape_cast %154 : vector<1x256xi1> to vector<1x256xi1>
    %156 = vector.broadcast %155 : vector<1x256xi1> to vector<2x256xi1>
    %157 = vector.broadcast %cst_53 : f32 to vector<2x256xf32>
    %158 = arith.select %156, %157, %152 : vector<2x256xi1>, vector<2x256xf32>
    %159 = arith.addf %151, %158 : vector<2x256xf32>
    %c2_i32_54 = arith.constant 2 : i32
    %160 = tpu.dynamic_rotate %159 by %c2_i32_54 dim 1 : vector<2x256xf32>, i32 -> vector<2x256xf32>
    %c2_i32_55 = arith.constant 2 : i32
    %161 = vector.broadcast %c2_i32_55 : i32 to vector<1x256xi32>
    %162 = arith.cmpi slt, %4, %161 : vector<1x256xi32>
    %cst_56 = arith.constant 0.000000e+00 : f32
    %163 = vector.shape_cast %162 : vector<1x256xi1> to vector<1x256xi1>
    %164 = vector.broadcast %163 : vector<1x256xi1> to vector<2x256xi1>
    %165 = vector.broadcast %cst_56 : f32 to vector<2x256xf32>
    %166 = arith.select %164, %165, %160 : vector<2x256xi1>, vector<2x256xf32>
    %167 = arith.addf %159, %166 : vector<2x256xf32>
    %c4_i32_57 = arith.constant 4 : i32
    %168 = tpu.dynamic_rotate %167 by %c4_i32_57 dim 1 : vector<2x256xf32>, i32 -> vector<2x256xf32>
    %c4_i32_58 = arith.constant 4 : i32
    %169 = vector.broadcast %c4_i32_58 : i32 to vector<1x256xi32>
    %170 = arith.cmpi slt, %4, %169 : vector<1x256xi32>
    %cst_59 = arith.constant 0.000000e+00 : f32
    %171 = vector.shape_cast %170 : vector<1x256xi1> to vector<1x256xi1>
    %172 = vector.broadcast %171 : vector<1x256xi1> to vector<2x256xi1>
    %173 = vector.broadcast %cst_59 : f32 to vector<2x256xf32>
    %174 = arith.select %172, %173, %168 : vector<2x256xi1>, vector<2x256xf32>
    %175 = arith.addf %167, %174 : vector<2x256xf32>
    %c8_i32_60 = arith.constant 8 : i32
    %176 = tpu.dynamic_rotate %175 by %c8_i32_60 dim 1 : vector<2x256xf32>, i32 -> vector<2x256xf32>
    %c8_i32_61 = arith.constant 8 : i32
    %177 = vector.broadcast %c8_i32_61 : i32 to vector<1x256xi32>
    %178 = arith.cmpi slt, %4, %177 : vector<1x256xi32>
    %cst_62 = arith.constant 0.000000e+00 : f32
    %179 = vector.shape_cast %178 : vector<1x256xi1> to vector<1x256xi1>
    %180 = vector.broadcast %179 : vector<1x256xi1> to vector<2x256xi1>
    %181 = vector.broadcast %cst_62 : f32 to vector<2x256xf32>
    %182 = arith.select %180, %181, %176 : vector<2x256xi1>, vector<2x256xf32>
    %183 = arith.addf %175, %182 : vector<2x256xf32>
    %c16_i32_63 = arith.constant 16 : i32
    %184 = tpu.dynamic_rotate %183 by %c16_i32_63 dim 1 : vector<2x256xf32>, i32 -> vector<2x256xf32>
    %c16_i32_64 = arith.constant 16 : i32
    %185 = vector.broadcast %c16_i32_64 : i32 to vector<1x256xi32>
    %186 = arith.cmpi slt, %4, %185 : vector<1x256xi32>
    %cst_65 = arith.constant 0.000000e+00 : f32
    %187 = vector.shape_cast %186 : vector<1x256xi1> to vector<1x256xi1>
    %188 = vector.broadcast %187 : vector<1x256xi1> to vector<2x256xi1>
    %189 = vector.broadcast %cst_65 : f32 to vector<2x256xf32>
    %190 = arith.select %188, %189, %184 : vector<2x256xi1>, vector<2x256xf32>
    %191 = arith.addf %183, %190 : vector<2x256xf32>
    %c32_i32_66 = arith.constant 32 : i32
    %192 = tpu.dynamic_rotate %191 by %c32_i32_66 dim 1 : vector<2x256xf32>, i32 -> vector<2x256xf32>
    %c32_i32_67 = arith.constant 32 : i32
    %193 = vector.broadcast %c32_i32_67 : i32 to vector<1x256xi32>
    %194 = arith.cmpi slt, %4, %193 : vector<1x256xi32>
    %cst_68 = arith.constant 0.000000e+00 : f32
    %195 = vector.shape_cast %194 : vector<1x256xi1> to vector<1x256xi1>
    %196 = vector.broadcast %195 : vector<1x256xi1> to vector<2x256xi1>
    %197 = vector.broadcast %cst_68 : f32 to vector<2x256xf32>
    %198 = arith.select %196, %197, %192 : vector<2x256xi1>, vector<2x256xf32>
    %199 = arith.addf %191, %198 : vector<2x256xf32>
    %c64_i32_69 = arith.constant 64 : i32
    %200 = tpu.dynamic_rotate %199 by %c64_i32_69 dim 1 : vector<2x256xf32>, i32 -> vector<2x256xf32>
    %c64_i32_70 = arith.constant 64 : i32
    %201 = vector.broadcast %c64_i32_70 : i32 to vector<1x256xi32>
    %202 = arith.cmpi slt, %4, %201 : vector<1x256xi32>
    %cst_71 = arith.constant 0.000000e+00 : f32
    %203 = vector.shape_cast %202 : vector<1x256xi1> to vector<1x256xi1>
    %204 = vector.broadcast %203 : vector<1x256xi1> to vector<2x256xi1>
    %205 = vector.broadcast %cst_71 : f32 to vector<2x256xf32>
    %206 = arith.select %204, %205, %200 : vector<2x256xi1>, vector<2x256xf32>
    %207 = arith.addf %199, %206 : vector<2x256xf32>
    %208 = vector.extract_strided_slice %207 {offsets = [0, 0], sizes = [1, 256], strides = [1, 1]} : vector<2x256xf32> to vector<1x256xf32>
    %209 = arith.mulf %208, %11 : vector<1x256xf32>
    %210 = vector.extract_strided_slice %207 {offsets = [1, 0], sizes = [1, 256], strides = [1, 1]} : vector<2x256xf32> to vector<1x256xf32>
    %211 = arith.mulf %210, %11 : vector<1x256xf32>
    %212 = arith.mulf %209, %209 : vector<1x256xf32>
    %213 = arith.subf %211, %212 : vector<1x256xf32>
    %cst_72 = arith.constant 0.000000e+00 : f32
    %214 = vector.broadcast %cst_72 : f32 to vector<1x256xf32>
    %215 = arith.maximumf %213, %214 : vector<1x256xf32>
    %cst_73 = arith.constant 9.99999996E-13 : f32
    %216 = vector.broadcast %cst_73 : f32 to vector<1x256xf32>
    %217 = arith.addf %215, %216 : vector<1x256xf32>
    %218 = math.rsqrt %217 : vector<1x256xf32>
    %219 = vector.broadcast %138 : vector<32x1xf32> to vector<32x256xf32>
    %220 = vector.broadcast %218 : vector<1x256xf32> to vector<32x256xf32>
    %221 = arith.mulf %219, %220 : vector<32x256xf32>
    %222 = vector.broadcast %209 : vector<1x256xf32> to vector<32x256xf32>
    %223 = arith.mulf %222, %221 : vector<32x256xf32>
    %224 = vector.broadcast %139 : vector<32x1xf32> to vector<32x256xf32>
    %225 = arith.subf %224, %223 : vector<32x256xf32>
    %226 = arith.mulf %145, %221 : vector<32x256xf32>
    %227 = arith.addf %226, %225 : vector<32x256xf32>
    %c4_i32_74 = arith.constant 4 : i32
    %228 = tpu.dynamic_rotate %227 by %c4_i32_74 dim 1 : vector<32x256xf32>, i32 -> vector<32x256xf32>
    %c4_i32_75 = arith.constant 4 : i32
    %229 = vector.broadcast %c4_i32_75 : i32 to vector<1x256xi32>
    %230 = arith.cmpi slt, %4, %229 : vector<1x256xi32>
    %cst_76 = arith.constant 0.000000e+00 : f32
    %231 = vector.shape_cast %230 : vector<1x256xi1> to vector<1x256xi1>
    %232 = vector.broadcast %231 : vector<1x256xi1> to vector<32x256xi1>
    %233 = vector.broadcast %cst_76 : f32 to vector<32x256xf32>
    %234 = arith.select %232, %233, %228 : vector<32x256xi1>, vector<32x256xf32>
    %235 = arith.truncf %234 : vector<32x256xf32> to vector<32x256xbf16>
    %c2_i32_77 = arith.constant 2 : i32
    %236 = tpu.dynamic_rotate %227 by %c2_i32_77 dim 1 : vector<32x256xf32>, i32 -> vector<32x256xf32>
    %c2_i32_78 = arith.constant 2 : i32
    %237 = vector.broadcast %c2_i32_78 : i32 to vector<1x256xi32>
    %238 = arith.cmpi slt, %4, %237 : vector<1x256xi32>
    %cst_79 = arith.constant 0.000000e+00 : f32
    %239 = vector.shape_cast %238 : vector<1x256xi1> to vector<1x256xi1>
    %240 = vector.broadcast %239 : vector<1x256xi1> to vector<32x256xi1>
    %241 = vector.broadcast %cst_79 : f32 to vector<32x256xf32>
    %242 = arith.select %240, %241, %236 : vector<32x256xi1>, vector<32x256xf32>
    %243 = arith.truncf %242 : vector<32x256xf32> to vector<32x256xbf16>
    %244 = arith.truncf %227 : vector<32x256xf32> to vector<32x256xbf16>
    %245 = tpu.concatenate %235, %243, %244, %12 in 0 : vector<32x256xbf16>, vector<32x256xbf16>, vector<32x256xbf16>, vector<32x256xbf16> -> vector<128x256xbf16>
    %c1_80 = arith.constant 1 : index
    %c0_81 = arith.constant 0 : index
    %c0_82 = arith.constant 0 : index
    %246 = vector.load %arg4[%c1_80, %c0_81, %c0_82] : memref<3x32x128xbf16, #tpu.memory_space<vmem>>, vector<1x32x128xbf16>
    %247 = vector.shape_cast %246 : vector<1x32x128xbf16> to vector<32x128xbf16>
    %cst_83 = arith.constant dense<0.000000e+00> : vector<32x256xf32>
    %248 = tpu.matmul %247, %245, %cst_83 {dimension_numbers = #tpu.dot_dimension_numbers<[1], [0], [0], [1], [0, 0, 1, 1], [], []>} : vector<32x128xbf16>, vector<128x256xbf16>, vector<32x256xf32> -> vector<32x256xf32>
    %c1_84 = arith.constant 1 : index
    %c0_85 = arith.constant 0 : index
    %c0_86 = arith.constant 0 : index
    %249 = vector.load %arg5[%c1_84, %c0_85, %c0_86] : memref<3x32x1xf32, #tpu.memory_space<vmem>>, vector<1x32x1xf32>
    %250 = vector.shape_cast %249 : vector<1x32x1xf32> to vector<32x1xf32>
    %251 = vector.broadcast %250 : vector<32x1xf32> to vector<32x256xf32>
    %252 = arith.addf %248, %251 : vector<32x256xf32>
    %253 = vector.extract_strided_slice %252 {offsets = [0, 0], sizes = [16, 256], strides = [1, 1]} : vector<32x256xf32> to vector<16x256xf32>
    %254 = arith.addf %253, %132 : vector<16x256xf32>
    %255 = vector.extract_strided_slice %252 {offsets = [16, 0], sizes = [16, 256], strides = [1, 1]} : vector<32x256xf32> to vector<16x256xf32>
    %256 = arith.addf %134, %255 : vector<16x256xf32>
    %c2 = arith.constant 2 : index
    %c0_87 = arith.constant 0 : index
    %c0_88 = arith.constant 0 : index
    %257 = vector.load %arg3[%c2, %c0_87, %c0_88] : memref<3x32x3xf32, #tpu.memory_space<vmem>>, vector<1x32x3xf32>
    %258 = vector.shape_cast %257 : vector<1x32x3xf32> to vector<32x3xf32>
    %259 = vector.extract_strided_slice %258 {offsets = [0, 0], sizes = [32, 1], strides = [1, 1]} : vector<32x3xf32> to vector<32x1xf32>
    %260 = vector.extract_strided_slice %258 {offsets = [0, 1], sizes = [32, 1], strides = [1, 1]} : vector<32x3xf32> to vector<32x1xf32>
    %261 = vector.extract_strided_slice %258 {offsets = [0, 2], sizes = [32, 1], strides = [1, 1]} : vector<32x3xf32> to vector<32x1xf32>
    %c2_89 = arith.constant 2 : index
    %c0_90 = arith.constant 0 : index
    %c0_91 = arith.constant 0 : index
    %262 = vector.load %arg2[%c2_89, %c0_90, %c0_91] : memref<3x32x16xbf16, #tpu.memory_space<vmem>>, vector<1x32x16xbf16>
    %263 = vector.shape_cast %262 : vector<1x32x16xbf16> to vector<32x16xbf16>
    %264 = arith.truncf %254 : vector<16x256xf32> to vector<16x256xbf16>
    %cst_92 = arith.constant dense<0.000000e+00> : vector<32x256xf32>
    %265 = tpu.matmul %263, %264, %cst_92 {dimension_numbers = #tpu.dot_dimension_numbers<[1], [0], [0], [1], [0, 0, 1, 1], [], []>} : vector<32x16xbf16>, vector<16x256xbf16>, vector<32x256xf32> -> vector<32x256xf32>
    %266 = vector.broadcast %259 : vector<32x1xf32> to vector<32x256xf32>
    %267 = arith.addf %265, %266 : vector<32x256xf32>
    %cst_93 = arith.constant dense<0.000000e+00> : vector<256xf32>
    %268 = vector.multi_reduction <add>, %267, %cst_93 [0] : vector<32x256xf32> to vector<256xf32>
    %269 = vector.shape_cast %268 : vector<256xf32> to vector<1x256xf32>
    %270 = arith.mulf %267, %267 : vector<32x256xf32>
    %cst_94 = arith.constant dense<0.000000e+00> : vector<256xf32>
    %271 = vector.multi_reduction <add>, %270, %cst_94 [0] : vector<32x256xf32> to vector<256xf32>
    %272 = vector.shape_cast %271 : vector<256xf32> to vector<1x256xf32>
    %273 = tpu.concatenate %269, %272 in 0 : vector<1x256xf32>, vector<1x256xf32> -> vector<2x256xf32>
    %c1_i32_95 = arith.constant 1 : i32
    %274 = tpu.dynamic_rotate %273 by %c1_i32_95 dim 1 : vector<2x256xf32>, i32 -> vector<2x256xf32>
    %c1_i32_96 = arith.constant 1 : i32
    %275 = vector.broadcast %c1_i32_96 : i32 to vector<1x256xi32>
    %276 = arith.cmpi slt, %4, %275 : vector<1x256xi32>
    %cst_97 = arith.constant 0.000000e+00 : f32
    %277 = vector.shape_cast %276 : vector<1x256xi1> to vector<1x256xi1>
    %278 = vector.broadcast %277 : vector<1x256xi1> to vector<2x256xi1>
    %279 = vector.broadcast %cst_97 : f32 to vector<2x256xf32>
    %280 = arith.select %278, %279, %274 : vector<2x256xi1>, vector<2x256xf32>
    %281 = arith.addf %273, %280 : vector<2x256xf32>
    %c2_i32_98 = arith.constant 2 : i32
    %282 = tpu.dynamic_rotate %281 by %c2_i32_98 dim 1 : vector<2x256xf32>, i32 -> vector<2x256xf32>
    %c2_i32_99 = arith.constant 2 : i32
    %283 = vector.broadcast %c2_i32_99 : i32 to vector<1x256xi32>
    %284 = arith.cmpi slt, %4, %283 : vector<1x256xi32>
    %cst_100 = arith.constant 0.000000e+00 : f32
    %285 = vector.shape_cast %284 : vector<1x256xi1> to vector<1x256xi1>
    %286 = vector.broadcast %285 : vector<1x256xi1> to vector<2x256xi1>
    %287 = vector.broadcast %cst_100 : f32 to vector<2x256xf32>
    %288 = arith.select %286, %287, %282 : vector<2x256xi1>, vector<2x256xf32>
    %289 = arith.addf %281, %288 : vector<2x256xf32>
    %c4_i32_101 = arith.constant 4 : i32
    %290 = tpu.dynamic_rotate %289 by %c4_i32_101 dim 1 : vector<2x256xf32>, i32 -> vector<2x256xf32>
    %c4_i32_102 = arith.constant 4 : i32
    %291 = vector.broadcast %c4_i32_102 : i32 to vector<1x256xi32>
    %292 = arith.cmpi slt, %4, %291 : vector<1x256xi32>
    %cst_103 = arith.constant 0.000000e+00 : f32
    %293 = vector.shape_cast %292 : vector<1x256xi1> to vector<1x256xi1>
    %294 = vector.broadcast %293 : vector<1x256xi1> to vector<2x256xi1>
    %295 = vector.broadcast %cst_103 : f32 to vector<2x256xf32>
    %296 = arith.select %294, %295, %290 : vector<2x256xi1>, vector<2x256xf32>
    %297 = arith.addf %289, %296 : vector<2x256xf32>
    %c8_i32_104 = arith.constant 8 : i32
    %298 = tpu.dynamic_rotate %297 by %c8_i32_104 dim 1 : vector<2x256xf32>, i32 -> vector<2x256xf32>
    %c8_i32_105 = arith.constant 8 : i32
    %299 = vector.broadcast %c8_i32_105 : i32 to vector<1x256xi32>
    %300 = arith.cmpi slt, %4, %299 : vector<1x256xi32>
    %cst_106 = arith.constant 0.000000e+00 : f32
    %301 = vector.shape_cast %300 : vector<1x256xi1> to vector<1x256xi1>
    %302 = vector.broadcast %301 : vector<1x256xi1> to vector<2x256xi1>
    %303 = vector.broadcast %cst_106 : f32 to vector<2x256xf32>
    %304 = arith.select %302, %303, %298 : vector<2x256xi1>, vector<2x256xf32>
    %305 = arith.addf %297, %304 : vector<2x256xf32>
    %c16_i32_107 = arith.constant 16 : i32
    %306 = tpu.dynamic_rotate %305 by %c16_i32_107 dim 1 : vector<2x256xf32>, i32 -> vector<2x256xf32>
    %c16_i32_108 = arith.constant 16 : i32
    %307 = vector.broadcast %c16_i32_108 : i32 to vector<1x256xi32>
    %308 = arith.cmpi slt, %4, %307 : vector<1x256xi32>
    %cst_109 = arith.constant 0.000000e+00 : f32
    %309 = vector.shape_cast %308 : vector<1x256xi1> to vector<1x256xi1>
    %310 = vector.broadcast %309 : vector<1x256xi1> to vector<2x256xi1>
    %311 = vector.broadcast %cst_109 : f32 to vector<2x256xf32>
    %312 = arith.select %310, %311, %306 : vector<2x256xi1>, vector<2x256xf32>
    %313 = arith.addf %305, %312 : vector<2x256xf32>
    %c32_i32_110 = arith.constant 32 : i32
    %314 = tpu.dynamic_rotate %313 by %c32_i32_110 dim 1 : vector<2x256xf32>, i32 -> vector<2x256xf32>
    %c32_i32_111 = arith.constant 32 : i32
    %315 = vector.broadcast %c32_i32_111 : i32 to vector<1x256xi32>
    %316 = arith.cmpi slt, %4, %315 : vector<1x256xi32>
    %cst_112 = arith.constant 0.000000e+00 : f32
    %317 = vector.shape_cast %316 : vector<1x256xi1> to vector<1x256xi1>
    %318 = vector.broadcast %317 : vector<1x256xi1> to vector<2x256xi1>
    %319 = vector.broadcast %cst_112 : f32 to vector<2x256xf32>
    %320 = arith.select %318, %319, %314 : vector<2x256xi1>, vector<2x256xf32>
    %321 = arith.addf %313, %320 : vector<2x256xf32>
    %c64_i32_113 = arith.constant 64 : i32
    %322 = tpu.dynamic_rotate %321 by %c64_i32_113 dim 1 : vector<2x256xf32>, i32 -> vector<2x256xf32>
    %c64_i32_114 = arith.constant 64 : i32
    %323 = vector.broadcast %c64_i32_114 : i32 to vector<1x256xi32>
    %324 = arith.cmpi slt, %4, %323 : vector<1x256xi32>
    %cst_115 = arith.constant 0.000000e+00 : f32
    %325 = vector.shape_cast %324 : vector<1x256xi1> to vector<1x256xi1>
    %326 = vector.broadcast %325 : vector<1x256xi1> to vector<2x256xi1>
    %327 = vector.broadcast %cst_115 : f32 to vector<2x256xf32>
    %328 = arith.select %326, %327, %322 : vector<2x256xi1>, vector<2x256xf32>
    %329 = arith.addf %321, %328 : vector<2x256xf32>
    %330 = vector.extract_strided_slice %329 {offsets = [0, 0], sizes = [1, 256], strides = [1, 1]} : vector<2x256xf32> to vector<1x256xf32>
    %331 = arith.mulf %330, %11 : vector<1x256xf32>
    %332 = vector.extract_strided_slice %329 {offsets = [1, 0], sizes = [1, 256], strides = [1, 1]} : vector<2x256xf32> to vector<1x256xf32>
    %333 = arith.mulf %332, %11 : vector<1x256xf32>
    %334 = arith.mulf %331, %331 : vector<1x256xf32>
    %335 = arith.subf %333, %334 : vector<1x256xf32>
    %cst_116 = arith.constant 0.000000e+00 : f32
    %336 = vector.broadcast %cst_116 : f32 to vector<1x256xf32>
    %337 = arith.maximumf %335, %336 : vector<1x256xf32>
    %cst_117 = arith.constant 9.99999996E-13 : f32
    %338 = vector.broadcast %cst_117 : f32 to vector<1x256xf32>
    %339 = arith.addf %337, %338 : vector<1x256xf32>
    %340 = math.rsqrt %339 : vector<1x256xf32>
    %341 = vector.broadcast %260 : vector<32x1xf32> to vector<32x256xf32>
    %342 = vector.broadcast %340 : vector<1x256xf32> to vector<32x256xf32>
    %343 = arith.mulf %341, %342 : vector<32x256xf32>
    %344 = vector.broadcast %331 : vector<1x256xf32> to vector<32x256xf32>
    %345 = arith.mulf %344, %343 : vector<32x256xf32>
    %346 = vector.broadcast %261 : vector<32x1xf32> to vector<32x256xf32>
    %347 = arith.subf %346, %345 : vector<32x256xf32>
    %348 = arith.mulf %267, %343 : vector<32x256xf32>
    %349 = arith.addf %348, %347 : vector<32x256xf32>
    %c8_i32_118 = arith.constant 8 : i32
    %350 = tpu.dynamic_rotate %349 by %c8_i32_118 dim 1 : vector<32x256xf32>, i32 -> vector<32x256xf32>
    %c8_i32_119 = arith.constant 8 : i32
    %351 = vector.broadcast %c8_i32_119 : i32 to vector<1x256xi32>
    %352 = arith.cmpi slt, %4, %351 : vector<1x256xi32>
    %cst_120 = arith.constant 0.000000e+00 : f32
    %353 = vector.shape_cast %352 : vector<1x256xi1> to vector<1x256xi1>
    %354 = vector.broadcast %353 : vector<1x256xi1> to vector<32x256xi1>
    %355 = vector.broadcast %cst_120 : f32 to vector<32x256xf32>
    %356 = arith.select %354, %355, %350 : vector<32x256xi1>, vector<32x256xf32>
    %357 = arith.truncf %356 : vector<32x256xf32> to vector<32x256xbf16>
    %c4_i32_121 = arith.constant 4 : i32
    %358 = tpu.dynamic_rotate %349 by %c4_i32_121 dim 1 : vector<32x256xf32>, i32 -> vector<32x256xf32>
    %c4_i32_122 = arith.constant 4 : i32
    %359 = vector.broadcast %c4_i32_122 : i32 to vector<1x256xi32>
    %360 = arith.cmpi slt, %4, %359 : vector<1x256xi32>
    %cst_123 = arith.constant 0.000000e+00 : f32
    %361 = vector.shape_cast %360 : vector<1x256xi1> to vector<1x256xi1>
    %362 = vector.broadcast %361 : vector<1x256xi1> to vector<32x256xi1>
    %363 = vector.broadcast %cst_123 : f32 to vector<32x256xf32>
    %364 = arith.select %362, %363, %358 : vector<32x256xi1>, vector<32x256xf32>
    %365 = arith.truncf %364 : vector<32x256xf32> to vector<32x256xbf16>
    %366 = arith.truncf %349 : vector<32x256xf32> to vector<32x256xbf16>
    %367 = tpu.concatenate %357, %365, %366, %12 in 0 : vector<32x256xbf16>, vector<32x256xbf16>, vector<32x256xbf16>, vector<32x256xbf16> -> vector<128x256xbf16>
    %c2_124 = arith.constant 2 : index
    %c0_125 = arith.constant 0 : index
    %c0_126 = arith.constant 0 : index
    %368 = vector.load %arg4[%c2_124, %c0_125, %c0_126] : memref<3x32x128xbf16, #tpu.memory_space<vmem>>, vector<1x32x128xbf16>
    %369 = vector.shape_cast %368 : vector<1x32x128xbf16> to vector<32x128xbf16>
    %cst_127 = arith.constant dense<0.000000e+00> : vector<32x256xf32>
    %370 = tpu.matmul %369, %367, %cst_127 {dimension_numbers = #tpu.dot_dimension_numbers<[1], [0], [0], [1], [0, 0, 1, 1], [], []>} : vector<32x128xbf16>, vector<128x256xbf16>, vector<32x256xf32> -> vector<32x256xf32>
    %c2_128 = arith.constant 2 : index
    %c0_129 = arith.constant 0 : index
    %c0_130 = arith.constant 0 : index
    %371 = vector.load %arg5[%c2_128, %c0_129, %c0_130] : memref<3x32x1xf32, #tpu.memory_space<vmem>>, vector<1x32x1xf32>
    %372 = vector.shape_cast %371 : vector<1x32x1xf32> to vector<32x1xf32>
    %373 = vector.broadcast %372 : vector<32x1xf32> to vector<32x256xf32>
    %374 = arith.addf %370, %373 : vector<32x256xf32>
    %375 = vector.extract_strided_slice %374 {offsets = [0, 0], sizes = [16, 256], strides = [1, 1]} : vector<32x256xf32> to vector<16x256xf32>
    %376 = arith.addf %375, %254 : vector<16x256xf32>
    %377 = vector.extract_strided_slice %374 {offsets = [16, 0], sizes = [16, 256], strides = [1, 1]} : vector<32x256xf32> to vector<16x256xf32>
    %378 = arith.addf %256, %377 : vector<16x256xf32>
    %c0_131 = arith.constant 0 : index
    %c0_132 = arith.constant 0 : index
    %379 = vector.load %arg6[%c0_131, %c0_132] : memref<16x256xf32, #tpu.memory_space<vmem>>, vector<16x256xf32>
    tpu.vector_store %arg6[%c0_131, %c0_132], %376 {strides = array<i32>} : memref<16x256xf32, #tpu.memory_space<vmem>>, vector<16x256xf32>,
    %c0_133 = arith.constant 0 : index
    %c0_134 = arith.constant 0 : index
    %380 = vector.load %arg7[%c0_133, %c0_134] : memref<16x256xf32, #tpu.memory_space<vmem>>, vector<16x256xf32>
    tpu.vector_store %arg7[%c0_133, %c0_134], %378 {strides = array<i32>} : memref<16x256xf32, #tpu.memory_space<vmem>>, vector<16x256xf32>,
    return
  }
  func.func @transform_0(%arg0: i32) -> (i32, i32) {
    %c0_i32 = arith.constant 0 : i32
    %c0_i32_0 = arith.constant 0 : i32
    return %c0_i32, %arg0 : i32, i32
  }
  func.func @transform_1(%arg0: i32) -> (i32, i32, i32) {
    %c0_i32 = arith.constant 0 : i32
    %c0_i32_0 = arith.constant 0 : i32
    %c0_i32_1 = arith.constant 0 : i32
    %c0_i32_2 = arith.constant 0 : i32
    return %c0_i32, %c0_i32_0, %c0_i32_1 : i32, i32, i32
  }
  func.func @transform_2(%arg0: i32) -> (i32, i32, i32) {
    %c0_i32 = arith.constant 0 : i32
    %c0_i32_0 = arith.constant 0 : i32
    %c0_i32_1 = arith.constant 0 : i32
    %c0_i32_2 = arith.constant 0 : i32
    return %c0_i32, %c0_i32_0, %c0_i32_1 : i32, i32, i32
  }
  func.func @transform_3(%arg0: i32) -> (i32, i32, i32) {
    %c0_i32 = arith.constant 0 : i32
    %c0_i32_0 = arith.constant 0 : i32
    %c0_i32_1 = arith.constant 0 : i32
    %c0_i32_2 = arith.constant 0 : i32
    return %c0_i32, %c0_i32_0, %c0_i32_1 : i32, i32, i32
  }
  func.func @transform_4(%arg0: i32) -> (i32, i32, i32) {
    %c0_i32 = arith.constant 0 : i32
    %c0_i32_0 = arith.constant 0 : i32
    %c0_i32_1 = arith.constant 0 : i32
    %c0_i32_2 = arith.constant 0 : i32
    return %c0_i32, %c0_i32_0, %c0_i32_1 : i32, i32, i32
  }
  func.func @transform_5(%arg0: i32) -> (i32, i32) {
    %c0_i32 = arith.constant 0 : i32
    %c0_i32_0 = arith.constant 0 : i32
    return %c0_i32, %arg0 : i32, i32
  }
  func.func @transform_6(%arg0: i32) -> (i32, i32) {
    %c0_i32 = arith.constant 0 : i32
    %c0_i32_0 = arith.constant 0 : i32
    return %c0_i32, %arg0 : i32, i32
  }
}

</mosaic_0001>

<llo_original>
// kernel: tpu_custom_call.1
$region0: #{tpu_custom_call.1}
  #allocation0 [shape = 'u32[]', space=smem, size = 0x4, offset = 0x4, fixed_abs, tag = 'smem constant byte address 0x4 - core index']
  #allocation1 [shape = 'u32[72,128]{1,0:T(1,128)}', space=vmem, size = 0x9000, scoped, tag = 'internal scratch']
  %s0 = inlined_call_operand.vmem [shape: f32[16,512], index: 0, kind: input, shape index: {}]
  %s1 = inlined_call_operand.vmem [shape: bf16[3,32,16], index: 1, kind: input, shape index: {}]
  %s2 = inlined_call_operand.vmem [shape: f32[3,32,3], index: 2, kind: input, shape index: {}]
  %s3 = inlined_call_operand.vmem [shape: bf16[3,32,128], index: 3, kind: input, shape index: {}]
  %s4 = inlined_call_operand.vmem [shape: f32[3,32,1], index: 4, kind: input, shape index: {}]
  %s5 = inlined_call_operand.hbm [shape: f32[16,512], index: 5, kind: output, shape index: {0}]
  %s6 = inlined_call_operand.hbm [shape: f32[16,512], index: 6, kind: output, shape index: {1}]
  %7 = xla_tuple %s5, %s6
  %s8 = sld [smem:[#allocation0]]
  $region84: #{tpu_custom_call.1} parent=0
    _
  %s10 = ssub.s32 1, %s8
  %s11 = scalar_select 0, %s10, %s8
  $region1: #{tpu_custom_call.1} parent=0
    #allocation2 [shape = 'u8[32768]{0}', space=vmem, size = 0x8000, scoped, tag = 'input window, operand 0']
    #allocation3 [shape = 'u8[32768]{0}', space=vmem, size = 0x8000, scoped, tag = 'output window, operand 0']
    #allocation4 [shape = 's32[2]{0}', space=sflag, size = 0x8, scoped, tag = 'scoped memory for tpu_custom_call.1']
    #allocation5 [shape = 'u8[32768]{0}', space=vmem, size = 0x8000, scoped, tag = 'output window, operand 1']
    #allocation6 [shape = 's32[2]{0}', space=sflag, size = 0x8, scoped, tag = 'scoped memory for tpu_custom_call.1']
    %12 = vsyncpa [#allocation4], 0
    %s13 = scalar_lea.sflag [#allocation4], 1
    %14 = vsyncpa %s13, 0
    %15 = vsyncpa [#allocation6], 0
    %s16 = scalar_lea.sflag [#allocation6], 1
    %17 = vsyncpa %s16, 0
    loop: start=0, step=1, limit=4
    $region2: #{tpu_custom_call.1} parent=1 // loop_pre_header
      _
    $region3: #{tpu_custom_call.1} parent=1 // loop_header
      %s19 = sphi 0, %s23
      %p20 = scmp.ge.s32.totalorder %s19, 4
      %s29 = sphi 0, %s31
      %s32 = sphi 0, %s29
      %s33 = sphi 0, %s32
      %s49 = sphi 0, %s33
      %s53 = sphi 0, %s53
      %s55 = sphi 0, %s53
      %s56 = sphi 0, %s55
      %s70 = sphi 0, %s56
      %s74 = sphi 0, %s74
      %s76 = sphi 0, %s74
      %s77 = sphi 0, %s76
      %s91 = sphi 0, %s77
      %s95 = sphi 0, %s95
      %s97 = sphi 0, %s95
      %s98 = sphi 0, %s97
      %s112 = sphi 0, %s98
      %s116 = sphi 0, %s116
      %s118 = sphi 0, %s116
      %s119 = sphi 0, %s118
      %s133 = sphi 0, %s119
      %s139 = sphi 0, %s141
      %s142 = sphi 0, %s139
      %s143 = sphi 0, %s142
      %s159 = sphi 0, %s143
      %s165 = sphi 0, %s167
      %s168 = sphi 0, %s165
      %s169 = sphi 0, %s168
      %s185 = sphi 0, %s169
    $region4: #{tpu_custom_call.1} parent=1 // loop_header_branch
      %22 = sbr.rel (%p20) target = $region8
    $region5: #{tpu_custom_call.1} parent=1 // loop_body
      %s24 = ssub.s32 %s19, 1
      %s25 = ssub.s32 %s19, 2
      %s26 = sadd.s32 %s19, 1
      %s27 = ssub.s32 %s19, %s26
      %p28 = scmp.eq.s32.totalorder %s27, 0
      %s30 = sadd.s32 %s29, 1
      %s31 = scalar_select %p28, %s29, %s30
      %p34 = pneg %p28
      %p35 = scmp.eq.s32.totalorder %s19, 1
      %p36 = por %p34, %p35
      %p37 = scmp.ne.s32.totalorder %s29, %s32
      %p38 = scmp.eq.s32.totalorder %s19, 0
      %p39 = por %p37, %p38
      %p40 = scmp.ne.s32.totalorder %s29, %s32
      %p41 = scmp.eq.s32.totalorder %s24, 1
      %p42 = por %p40, %p41
      %p43 = scmp.ne.s32.totalorder %s32, %s33
      %p44 = scmp.eq.s32.totalorder %s24, 0
      %p45 = por %p43, %p44
      %p46 = scmp.ne.s32.totalorder %s32, %s33
      %p47 = scmp.eq.s32.totalorder %s25, 1
      %p48 = por %p46, %p47
      %p50 = scmp.ne.s32.totalorder %s33, %s49
      %p51 = scmp.eq.s32.totalorder %s25, 0
      %p52 = por %p50, %p51
      %s54 = sadd.s32 %s53, 1
      %p57 = scmp.eq.s32.totalorder %s19, 1
      %p58 = scmp.ne.s32.totalorder %s53, %s55
      %p59 = scmp.eq.s32.totalorder %s19, 0
      %p60 = por %p58, %p59
      %p61 = scmp.ne.s32.totalorder %s53, %s55
      %p62 = scmp.eq.s32.totalorder %s24, 1
      %p63 = por %p61, %p62
      %p64 = scmp.ne.s32.totalorder %s55, %s56
      %p65 = scmp.eq.s32.totalorder %s24, 0
      %p66 = por %p64, %p65
      %p67 = scmp.ne.s32.totalorder %s55, %s56
      %p68 = scmp.eq.s32.totalorder %s25, 1
      %p69 = por %p67, %p68
      %p71 = scmp.ne.s32.totalorder %s56, %s70
      %p72 = scmp.eq.s32.totalorder %s25, 0
      %p73 = por %p71, %p72
      %s75 = sadd.s32 %s74, 1
      %p78 = scmp.eq.s32.totalorder %s19, 1
      %p79 = scmp.ne.s32.totalorder %s74, %s76
      %p80 = scmp.eq.s32.totalorder %s19, 0
      %p81 = por %p79, %p80
      %p82 = scmp.ne.s32.totalorder %s74, %s76
      %p83 = scmp.eq.s32.totalorder %s24, 1
      %p84 = por %p82, %p83
      %p85 = scmp.ne.s32.totalorder %s76, %s77
      %p86 = scmp.eq.s32.totalorder %s24, 0
      %p87 = por %p85, %p86
      %p88 = scmp.ne.s32.totalorder %s76, %s77
      %p89 = scmp.eq.s32.totalorder %s25, 1
      %p90 = por %p88, %p89
      %p92 = scmp.ne.s32.totalorder %s77, %s91
      %p93 = scmp.eq.s32.totalorder %s25, 0
      %p94 = por %p92, %p93
      %s96 = sadd.s32 %s95, 1
      %p99 = scmp.eq.s32.totalorder %s19, 1
      %p100 = scmp.ne.s32.totalorder %s95, %s97
      %p101 = scmp.eq.s32.totalorder %s19, 0
      %p102 = por %p100, %p101
      %p103 = scmp.ne.s32.totalorder %s95, %s97
      %p104 = scmp.eq.s32.totalorder %s24, 1
      %p105 = por %p103, %p104
      %p106 = scmp.ne.s32.totalorder %s97, %s98
      %p107 = scmp.eq.s32.totalorder %s24, 0
      %p108 = por %p106, %p107
      %p109 = scmp.ne.s32.totalorder %s97, %s98
      %p110 = scmp.eq.s32.totalorder %s25, 1
      %p111 = por %p109, %p110
      %p113 = scmp.ne.s32.totalorder %s98, %s112
      %p114 = scmp.eq.s32.totalorder %s25, 0
      %p115 = por %p113, %p114
      %s117 = sadd.s32 %s116, 1
      %p120 = scmp.eq.s32.totalorder %s19, 1
      %p121 = scmp.ne.s32.totalorder %s116, %s118
      %p122 = scmp.eq.s32.totalorder %s19, 0
      %p123 = por %p121, %p122
      %p124 = scmp.ne.s32.totalorder %s116, %s118
      %p125 = scmp.eq.s32.totalorder %s24, 1
      %p126 = por %p124, %p125
      %p127 = scmp.ne.s32.totalorder %s118, %s119
      %p128 = scmp.eq.s32.totalorder %s24, 0
      %p129 = por %p127, %p128
      %p130 = scmp.ne.s32.totalorder %s118, %s119
      %p131 = scmp.eq.s32.totalorder %s25, 1
      %p132 = por %p130, %p131
      %p134 = scmp.ne.s32.totalorder %s119, %s133
      %p135 = scmp.eq.s32.totalorder %s25, 0
      %p136 = por %p134, %p135
      %s137 = ssub.s32 %s19, %s26
      %p138 = scmp.eq.s32.totalorder %s137, 0
      %s140 = sadd.s32 %s139, 1
      %s141 = scalar_select %p138, %s139, %s140
      %p144 = pneg %p138
      %p145 = scmp.eq.s32.totalorder %s19, 1
      %p146 = por %p144, %p145
      %p147 = scmp.ne.s32.totalorder %s139, %s142
      %p148 = scmp.eq.s32.totalorder %s19, 0
      %p149 = por %p147, %p148
      %p150 = scmp.ne.s32.totalorder %s139, %s142
      %p151 = scmp.eq.s32.totalorder %s24, 1
      %p152 = por %p150, %p151
      %p153 = scmp.ne.s32.totalorder %s142, %s143
      %p154 = scmp.eq.s32.totalorder %s24, 0
      %p155 = por %p153, %p154
      %p156 = scmp.ne.s32.totalorder %s142, %s143
      %p157 = scmp.eq.s32.totalorder %s25, 1
      %p158 = por %p156, %p157
      %p160 = scmp.ne.s32.totalorder %s143, %s159
      %p161 = scmp.eq.s32.totalorder %s25, 0
      %p162 = por %p160, %p161
      %s163 = ssub.s32 %s19, %s26
      %p164 = scmp.eq.s32.totalorder %s163, 0
      %s166 = sadd.s32 %s165, 1
      %s167 = scalar_select %p164, %s165, %s166
      %p170 = pneg %p164
      %p171 = scmp.eq.s32.totalorder %s19, 1
      %p172 = por %p170, %p171
      %p173 = scmp.ne.s32.totalorder %s165, %s168
      %p174 = scmp.eq.s32.totalorder %s19, 0
      %p175 = por %p173, %p174
      %p176 = scmp.ne.s32.totalorder %s165, %s168
      %p177 = scmp.eq.s32.totalorder %s24, 1
      %p178 = por %p176, %p177
      %p179 = scmp.ne.s32.totalorder %s168, %s169
      %p180 = scmp.eq.s32.totalorder %s24, 0
      %p181 = por %p179, %p180
      %p182 = scmp.ne.s32.totalorder %s168, %s169
      %p183 = scmp.eq.s32.totalorder %s25, 1
      %p184 = por %p182, %p183
      %p186 = scmp.ne.s32.totalorder %s169, %s185
      %p187 = scmp.eq.s32.totalorder %s25, 0
      %p188 = por %p186, %p187
      %p189 = scmp.le.s32.totalorder 1, %s19
      %p190 = scmp.lt.s32.totalorder %s19, 3
      %p191 = pnand %p189, %p190
      %p192 = pneg %p191
      // Predicated region
      $region9: #{tpu_custom_call.1} parent=5 // pred_check
        _
      $region10: #{tpu_custom_call.1} parent=5 // pred_check_branch
        %194 = sbr.rel (%p191) target = $region12
      $region11: #{tpu_custom_call.1} parent=5 // pred_region
        %s195 = ssub.s32 %s19, 1
        // Predicated region
        $region13: #{tpu_custom_call.1} parent=11 // pred_check
          %p196 = pneg %p66
        $region14: #{tpu_custom_call.1} parent=11 // pred_check_branch
          %198 = sbr.rel (%p196) target = $region16
        $region15: #{tpu_custom_call.1} parent=11 // pred_region
          _
        $region16: #{tpu_custom_call.1} parent=11 // pred_fallthru
          _
        // Predicated region
        $region17: #{tpu_custom_call.1} parent=11 // pred_check
          %p199 = pneg %p87
        $region18: #{tpu_custom_call.1} parent=11 // pred_check_branch
          %201 = sbr.rel (%p199) target = $region20
        $region19: #{tpu_custom_call.1} parent=11 // pred_region
          _
        $region20: #{tpu_custom_call.1} parent=11 // pred_fallthru
          _
        // Predicated region
        $region21: #{tpu_custom_call.1} parent=11 // pred_check
          %p202 = pneg %p108
        $region22: #{tpu_custom_call.1} parent=11 // pred_check_branch
          %204 = sbr.rel (%p202) target = $region24
        $region23: #{tpu_custom_call.1} parent=11 // pred_region
          _
        $region24: #{tpu_custom_call.1} parent=11 // pred_fallthru
          _
        // Predicated region
        $region25: #{tpu_custom_call.1} parent=11 // pred_check
          %p205 = pneg %p129
        $region26: #{tpu_custom_call.1} parent=11 // pred_check_branch
          %207 = sbr.rel (%p205) target = $region28
        $region27: #{tpu_custom_call.1} parent=11 // pred_region
          _
        $region28: #{tpu_custom_call.1} parent=11 // pred_fallthru
          _
      $region12: #{tpu_custom_call.1} parent=5 // pred_fallthru
        _
      %p208 = scmp.lt.s32.totalorder %s19, 2
      // Predicated region
      $region29: #{tpu_custom_call.1} parent=5 // pred_check
        %p209 = pneg %p208
      $region30: #{tpu_custom_call.1} parent=5 // pred_check_branch
        %211 = sbr.rel (%p209) target = $region32
      $region31: #{tpu_custom_call.1} parent=5 // pred_region
        // Predicated region
        $region33: #{tpu_custom_call.1} parent=31 // pred_check
          %p212 = pneg %p39
        $region34: #{tpu_custom_call.1} parent=31 // pred_check_branch
          %214 = sbr.rel (%p212) target = $region36
        $region35: #{tpu_custom_call.1} parent=31 // pred_region
          %s215 = sand.u32 %s29, 1
          %s216 = sand.u32 %s29, 1
          %s217 = smul.addr %s216, 32
          %s218 = scalar_lea.vmem [#allocation2], %s217
          %s219 = smul.u32 2, %s19
          %s220 = smul.addr %s219, 8
          %s221 = scalar_lea.vmem %s0, %s220
          // Predicated region
          $region37: #{tpu_custom_call.1} parent=35 // pred_check
            _
          $region38: #{tpu_custom_call.1} parent=35 // pred_check_branch
            %223 = sbr.rel (0) target = $region40
          $region39: #{tpu_custom_call.1} parent=35 // pred_region
            // Predicated region
            $region41: #{tpu_custom_call.1} parent=39 // pred_check
              _
            $region42: #{tpu_custom_call.1} parent=39 // pred_check_branch
              %225 = sbr.rel (0) target = $region44
            $region43: #{tpu_custom_call.1} parent=39 // pred_region
              loop: start=0, step=1, limit=1
              $region45: #{tpu_custom_call.1} parent=43 // loop_pre_header
                _
              $region46: #{tpu_custom_call.1} parent=43 // loop_header
                %s227 = sphi 0, %s231
                %p228 = scmp.ge.s32.totalorder %s227, 1
                %s232 = sphi %s221, %s221
                %s233 = sphi %s218, %s218
              $region47: #{tpu_custom_call.1} parent=43 // loop_header_branch
                %230 = sbr.rel (%p228) target = $region51
              $region48: #{tpu_custom_call.1} parent=43 // loop_body
                %v234 = vld [vmem:[%s232] sm:$0xff]
                %235 = vst [vmem:[%s233] sm:$0xff] %v234
                %v236 = vld [vmem:[%s232 + $0x8] sm:$0xff]
                %237 = vst [vmem:[%s233 + $0x8] sm:$0xff] %v236
                %v238 = vld [vmem:[%s232 + $0x20] sm:$0xff]
                %239 = vst [vmem:[%s233 + $0x10] sm:$0xff] %v238
                %v240 = vld [vmem:[%s232 + $0x28] sm:$0xff]
                %241 = vst [vmem:[%s233 + $0x18] sm:$0xff] %v240
              $region49: #{tpu_custom_call.1} parent=43 // loop_footer
                %s231 = sadd.s32 1, %s227
              $region50: #{tpu_custom_call.1} parent=43 // loop_footer_branch
                %226 = sbr.rel target = $region46
              $region51: #{tpu_custom_call.1} parent=43 // loop_exit
                _
            $region44: #{tpu_custom_call.1} parent=39 // pred_fallthru
              _
            // Predicated region
            $region52: #{tpu_custom_call.1} parent=39 // pred_check
              _
            $region53: #{tpu_custom_call.1} parent=39 // pred_check_branch
              %243 = sbr.rel target = $region55
            $region54: #{tpu_custom_call.1} parent=39 // pred_region
              _
            $region55: #{tpu_custom_call.1} parent=39 // pred_fallthru
              _
          $region40: #{tpu_custom_call.1} parent=35 // pred_fallthru
            _
          %244 = vnop
        $region36: #{tpu_custom_call.1} parent=31 // pred_fallthru
          _
      $region32: #{tpu_custom_call.1} parent=5 // pred_fallthru
        _
      %p245 = scmp.le.s32.totalorder 1, %s19
      %p246 = scmp.lt.s32.totalorder %s19, 3
      %p247 = pnand %p245, %p246
      %p248 = pneg %p247
      // Predicated region
      $region56: #{tpu_custom_call.1} parent=5 // pred_check
        _
      $region57: #{tpu_custom_call.1} parent=5 // pred_check_branch
        %250 = sbr.rel (%p247) target = $region59
      $region58: #{tpu_custom_call.1} parent=5 // pred_region
        %s251 = ssub.s32 %s19, 1
        %s252 = sand.u32 %s32, 1
        %s253 = sand.u32 %s32, 1
        %s254 = smul.addr %s253, 32
        %s255 = scalar_lea.vmem [#allocation2], %s254
        // Predicated region
        $region60: #{tpu_custom_call.1} parent=58 // pred_check
          %p256 = pneg %p45
        $region61: #{tpu_custom_call.1} parent=58 // pred_check_branch
          %258 = sbr.rel (%p256) target = $region63
        $region62: #{tpu_custom_call.1} parent=58 // pred_region
          _
        $region63: #{tpu_custom_call.1} parent=58 // pred_fallthru
          _
        %s259 = sand.u32 %s32, 1
        %s260 = sand.u32 %s32, 1
        %s261 = smul.addr %s260, 32
        %s262 = scalar_lea.vmem [#allocation2], %s261
        %p263 = pneg %p45
        %p264 = pneg %p42
        %p265 = pneg %p66
        %p266 = pneg %p63
        %p267 = pneg %p87
        %p268 = pneg %p84
        %p269 = pneg %p108
        %p270 = pneg %p105
        %p271 = pneg %p129
        %p272 = pneg %p126
        %p273 = pneg %p155
        %p274 = pneg %p152
        %s275 = sand.u32 %s142, 1
        %s276 = scalar_lea.sflag [#allocation4], %s275
        %s277 = sand.u32 %s142, 1
        %s278 = smul.addr %s277, 32
        %s279 = scalar_lea.vmem [#allocation3], %s278
        %p280 = pneg %p181
        %p281 = pneg %p178
        %s282 = sand.u32 %s168, 1
        %s283 = scalar_lea.sflag [#allocation6], %s282
        %s284 = sand.u32 %s168, 1
        %s285 = smul.addr %s284, 32
        %s286 = scalar_lea.vmem [#allocation5], %s285
        %s287 = smul.u32 2, %s24
        %s288 = smul.u32 2, %s24
        %s289 = smul.u32 2, %s24
        %v291 = vld [vmem:[%s255] sm:$0xff]
        %v292 = vld [vmem:[%s255 + $0x8] sm:$0xff]
        %v293 = vld [vmem:[%s255 + $0x10] sm:$0xff]
        %v294 = vld [vmem:[%s255 + $0x18] sm:$0xff]
        %v295 = vlaneseq
        %v296 = vand.u32 %v295, 127
        %v297 = vadd.s32 %v296, 128
        %v298 = vand.u32 %v296, 127
        %v299 = vand.u32 %v297, 127
        %v300 = vadd.s32 %v298, 1
        %v301 = vadd.s32 %v299, 1
        %v302 = vcvt.s32.f32 %v300
        %v303 = vcvt.s32.f32 %v301
        %v304 = vmul.f32 %v302, 32.0
        %v305 = vmul.f32 %v303, 32.0
        %v306 = vrcp.pop %v304
        %v307 = vmul.f32 %v304, %v306
        %v308 = vsub.f32 1.0, %v307
        %v309 = vmul.f32 %v306, %v308
        %v310 = vadd.f32 %v306, %v309
        %vm311 = vweird.f32 %v304
        %vm312 = vweird.f32 %v306
        %vm313 = vmor %vm311, %vm312
        %v314 = vsel %vm313, %v306, %v310
        %v315 = vand.u32 2147483647, %v304
        %vm316 = vcmp.eq.f32.partialorder %v315, 8.507059e+37
        %v317 = vand.u32 %v304, 2147483648
        %v318 = vor.u32 1.1754944e-38, %v317
        %v319 = vsel %vm316, %v318, %v314
        %v320 = vmul.f32 1.0, %v319
        %v321 = vrcp.pop %v305
        %v322 = vmul.f32 %v305, %v321
        %v323 = vsub.f32 1.0, %v322
        %v324 = vmul.f32 %v321, %v323
        %v325 = vadd.f32 %v321, %v324
        %vm326 = vweird.f32 %v305
        %vm327 = vweird.f32 %v321
        %vm328 = vmor %vm326, %vm327
        %v329 = vsel %vm328, %v321, %v325
        %v330 = vand.u32 2147483647, %v305
        %vm331 = vcmp.eq.f32.partialorder %v330, 8.507059e+37
        %v332 = vand.u32 %v305, 2147483648
        %v333 = vor.u32 1.1754944e-38, %v332
        %v334 = vsel %vm331, %v333, %v329
        %v335 = vmul.f32 1.0, %v334
        %v336 = vld [vmem:[%s2] sm:$0xff]
        %v337 = vld [vmem:[%s2 + $0x8] sm:$0xff]
        %v338 = vld [vmem:[%s2 + $0x10] sm:$0xff]
        %v339 = vld [vmem:[%s2 + $0x18] sm:$0xff]
        %v340 = vld [vmem:[%s1] sm:$0xf]
        %v341 = vld [vmem:[%s1 + $0x4] sm:$0xf]
        %v342 = vld [vmem:[%s1 + $0x8] sm:$0xf]
        %v343 = vld [vmem:[%s1 + $0xc] sm:$0xf]
        %v344 = vpack.c.bf16 %v293, %v291
        %v345 = vpack.c.bf16 %v294, %v292
        %347 = vset.pattern.permute.xlu0 0
        %348 = vperm.xlu0 %347, %v336
        %v349 = vpop.permute.xlu0 %348
        %352 = vset.pattern.permute.xlu0 0
        %353 = vperm.xlu0 %352, %v337
        %v354 = vpop.permute.xlu0 %353
        %357 = vset.pattern.permute.xlu0 0
        %358 = vperm.xlu0 %357, %v338
        %v359 = vpop.permute.xlu0 %358
        %362 = vset.pattern.permute.xlu0 0
        %363 = vperm.xlu0 %362, %v339
        %v364 = vpop.permute.xlu0 %363
        %v370 = vunpack.c.l.b16 %v340
        %v371 = vunpack.c.l.b16 %v341
        %v372 = vunpack.c.l.b16 %v342
        %v373 = vunpack.c.l.b16 %v343
        %v374 = vpack.c.b16 %v371, %v370
        %v375 = vpack.c.b16 %v373, %v372
        %vm376 = vcmask 130048
        %v378 = vsel %vm376, %v374, 0
        %v381 = vsel %vm376, %v375, 0
        %383 = vmatpush.bf16.msra.mxu0 0
        %384 = vmatpush.bf16.msra.mxu0 0
        %385 = vmatpush.bf16.msra.mxu0 0
        %386 = vmatpush.bf16.msra.mxu0 0
        %387 = vmatpush.bf16.msra.mxu0 0
        %388 = vmatpush.bf16.msra.mxu0 0
        %389 = vmatpush.bf16.msra.mxu0 0
        %390 = vmatpush.bf16.msra.mxu0 %v344
        %391 = vmatmul.bf16.gmra.mxu0 %v378
        %v392 = vpop.f32.mrf.mxu0
        %v393 = vadd.f32 %v349, %v392
        %v394 = vpop.f32.mrf.mxu0
        %v395 = vadd.f32 %v354, %v394
        %396 = vmatmul.bf16.gmra.mxu0 %v381
        %v397 = vpop.f32.mrf.mxu0
        %v398 = vadd.f32 %v359, %v397
        %v399 = vpop.f32.mrf.mxu0
        %v400 = vadd.f32 %v364, %v399
        %401 = vdwg.mxu0
        %402 = vmatpush.bf16.msra.mxu0 0
        %403 = vmatpush.bf16.msra.mxu0 0
        %404 = vmatpush.bf16.msra.mxu0 0
        %405 = vmatpush.bf16.msra.mxu0 0
        %406 = vmatpush.bf16.msra.mxu0 0
        %407 = vmatpush.bf16.msra.mxu0 0
        %408 = vmatpush.bf16.msra.mxu0 0
        %409 = vmatpush.bf16.msra.mxu0 %v345
        %410 = vmatmul.bf16.gmra.mxu0 %v378
        %v411 = vpop.f32.mrf.mxu0
        %v412 = vadd.f32 %v349, %v411
        %v413 = vpop.f32.mrf.mxu0
        %v414 = vadd.f32 %v354, %v413
        %415 = vmatmul.bf16.gmra.mxu0 %v381
        %v416 = vpop.f32.mrf.mxu0
        %v417 = vadd.f32 %v359, %v416
        %v418 = vpop.f32.mrf.mxu0
        %v419 = vadd.f32 %v364, %v418
        %420 = vdwg.mxu0
        %v421 = vadd.f32 %v393, %v395
        %v422 = vadd.f32 %v421, %v398
        %v423 = vadd.f32 %v422, %v400
        %v424 = vrot.slane %v423, 4
        %v425 = vadd.f32 %v423, %v424
        %v426 = vrot.slane %v425, 2
        %v427 = vadd.f32 %v425, %v426
        %v428 = vrot.slane %v427, 1
        %v429 = vadd.f32 %v427, %v428
        %v430 = vadd.f32 %v412, %v414
        %v431 = vadd.f32 %v430, %v417
        %v432 = vadd.f32 %v431, %v419
        %v433 = vrot.slane %v432, 4
        %v434 = vadd.f32 %v432, %v433
        %v435 = vrot.slane %v434, 2
        %v436 = vadd.f32 %v434, %v435
        %v437 = vrot.slane %v436, 1
        %v438 = vadd.f32 %v436, %v437
        %v439 = vmul.f32 %v393, %v393
        %v440 = vmul.f32 %v412, %v412
        %v441 = vmul.f32 %v395, %v395
        %v442 = vmul.f32 %v414, %v414
        %v443 = vmul.f32 %v398, %v398
        %v444 = vmul.f32 %v417, %v417
        %v445 = vmul.f32 %v400, %v400
        %v446 = vmul.f32 %v419, %v419
        %v447 = vadd.f32 %v439, %v441
        %v448 = vadd.f32 %v447, %v443
        %v449 = vadd.f32 %v448, %v445
        %v450 = vrot.slane %v449, 4
        %v451 = vadd.f32 %v449, %v450
        %v452 = vrot.slane %v451, 2
        %v453 = vadd.f32 %v451, %v452
        %v454 = vrot.slane %v453, 1
        %v455 = vadd.f32 %v453, %v454
        %v456 = vadd.f32 %v440, %v442
        %v457 = vadd.f32 %v456, %v444
        %v458 = vadd.f32 %v457, %v446
        %v459 = vrot.slane %v458, 4
        %v460 = vadd.f32 %v458, %v459
        %v461 = vrot.slane %v460, 2
        %v462 = vadd.f32 %v460, %v461
        %v463 = vrot.slane %v462, 1
        %v464 = vadd.f32 %v462, %v463
        %vm465 = vcmask 1040384
        %v466 = vsel %vm465, %v429, %v455
        %v467 = vsel %vm465, %v438, %v464
        %468 = vrot.lane.b32.xlu0 %v466, 1
        %v469 = vpop.permute.xlu0 %468
        %470 = vrot.lane.b32.xlu0 %v467, 1
        %v471 = vpop.permute.xlu0 %470
        %vm472 = vcmp.lt.s32.totalorder %v296, 1
        %v473 = vsel %vm472, %v469, %v471
        %v474 = vsel %vm472, %v471, %v469
        %vm475 = vcmp.lt.s32.totalorder %v298, 1
        %vm476 = vcmp.lt.s32.totalorder %v299, 1
        %v477 = vsel %vm475, 1, 0
        %v478 = vsel %vm476, 1, 0
        %vm479 = vcmp.eq.s32.totalorder %v477, 1
        %vm480 = vcmp.eq.s32.totalorder %v478, 1
        %v481 = vsel %vm479, 0.0, %v474
        %v482 = vsel %vm480, 0.0, %v473
        %v483 = vadd.f32 %v466, %v481
        %v484 = vadd.f32 %v467, %v482
        %485 = vrot.lane.b32.xlu0 %v483, 2
        %v486 = vpop.permute.xlu0 %485
        %487 = vrot.lane.b32.xlu0 %v484, 2
        %v488 = vpop.permute.xlu0 %487
        %vm489 = vcmp.lt.s32.totalorder %v296, 2
        %v490 = vsel %vm489, %v486, %v488
        %v491 = vsel %vm489, %v488, %v486
        %vm492 = vcmp.lt.s32.totalorder %v298, 2
        %vm493 = vcmp.lt.s32.totalorder %v299, 2
        %v494 = vsel %vm492, 1, 0
        %v495 = vsel %vm493, 1, 0
        %vm496 = vcmp.eq.s32.totalorder %v494, 1
        %vm497 = vcmp.eq.s32.totalorder %v495, 1
        %v498 = vsel %vm496, 0.0, %v491
        %v499 = vsel %vm497, 0.0, %v490
        %v500 = vadd.f32 %v483, %v498
        %v501 = vadd.f32 %v484, %v499
        %502 = vrot.lane.b32.xlu0 %v500, 4
        %v503 = vpop.permute.xlu0 %502
        %504 = vrot.lane.b32.xlu0 %v501, 4
        %v505 = vpop.permute.xlu0 %504
        %vm506 = vcmp.lt.s32.totalorder %v296, 4
        %v507 = vsel %vm506, %v503, %v505
        %v508 = vsel %vm506, %v505, %v503
        %vm509 = vcmp.lt.s32.totalorder %v298, 4
        %vm510 = vcmp.lt.s32.totalorder %v299, 4
        %v511 = vsel %vm509, 1, 0
        %v512 = vsel %vm510, 1, 0
        %vm513 = vcmp.eq.s32.totalorder %v511, 1
        %vm514 = vcmp.eq.s32.totalorder %v512, 1
        %v515 = vsel %vm513, 0.0, %v508
        %v516 = vsel %vm514, 0.0, %v507
        %v517 = vadd.f32 %v500, %v515
        %v518 = vadd.f32 %v501, %v516
        %519 = vrot.lane.b32.xlu0 %v517, 8
        %v520 = vpop.permute.xlu0 %519
        %521 = vrot.lane.b32.xlu0 %v518, 8
        %v522 = vpop.permute.xlu0 %521
        %vm523 = vcmp.lt.s32.totalorder %v296, 8
        %v524 = vsel %vm523, %v520, %v522
        %v525 = vsel %vm523, %v522, %v520
        %vm526 = vcmp.lt.s32.totalorder %v298, 8
        %vm527 = vcmp.lt.s32.totalorder %v299, 8
        %v528 = vsel %vm526, 1, 0
        %v529 = vsel %vm527, 1, 0
        %vm530 = vcmp.eq.s32.totalorder %v528, 1
        %vm531 = vcmp.eq.s32.totalorder %v529, 1
        %v532 = vsel %vm530, 0.0, %v525
        %v533 = vsel %vm531, 0.0, %v524
        %v534 = vadd.f32 %v517, %v532
        %v535 = vadd.f32 %v518, %v533
        %536 = vrot.lane.b32.xlu0 %v534, 16
        %v537 = vpop.permute.xlu0 %536
        %538 = vrot.lane.b32.xlu0 %v535, 16
        %v539 = vpop.permute.xlu0 %538
        %vm540 = vcmp.lt.s32.totalorder %v296, 16
        %v541 = vsel %vm540, %v537, %v539
        %v542 = vsel %vm540, %v539, %v537
        %vm543 = vcmp.lt.s32.totalorder %v298, 16
        %vm544 = vcmp.lt.s32.totalorder %v299, 16
        %v545 = vsel %vm543, 1, 0
        %v546 = vsel %vm544, 1, 0
        %vm547 = vcmp.eq.s32.totalorder %v545, 1
        %vm548 = vcmp.eq.s32.totalorder %v546, 1
        %v549 = vsel %vm547, 0.0, %v542
        %v550 = vsel %vm548, 0.0, %v541
        %v551 = vadd.f32 %v534, %v549
        %v552 = vadd.f32 %v535, %v550
        %553 = vrot.lane.b32.xlu0 %v551, 32
        %v554 = vpop.permute.xlu0 %553
        %555 = vrot.lane.b32.xlu0 %v552, 32
        %v556 = vpop.permute.xlu0 %555
        %vm557 = vcmp.lt.s32.totalorder %v296, 32
        %v558 = vsel %vm557, %v554, %v556
        %v559 = vsel %vm557, %v556, %v554
        %vm560 = vcmp.lt.s32.totalorder %v298, 32
        %vm561 = vcmp.lt.s32.totalorder %v299, 32
        %v562 = vsel %vm560, 1, 0
        %v563 = vsel %vm561, 1, 0
        %vm564 = vcmp.eq.s32.totalorder %v562, 1
        %vm565 = vcmp.eq.s32.totalorder %v563, 1
        %v566 = vsel %vm564, 0.0, %v559
        %v567 = vsel %vm565, 0.0, %v558
        %v568 = vadd.f32 %v551, %v566
        %v569 = vadd.f32 %v552, %v567
        %570 = vrot.lane.b32.xlu0 %v568, 64
        %v571 = vpop.permute.xlu0 %570
        %572 = vrot.lane.b32.xlu0 %v569, 64
        %v573 = vpop.permute.xlu0 %572
        %vm574 = vcmp.lt.s32.totalorder %v296, 64
        %v575 = vsel %vm574, %v571, %v573
        %v576 = vsel %vm574, %v573, %v571
        %vm577 = vcmp.lt.s32.totalorder %v298, 64
        %vm578 = vcmp.lt.s32.totalorder %v299, 64
        %v579 = vsel %vm577, 1, 0
        %v580 = vsel %vm578, 1, 0
        %vm581 = vcmp.eq.s32.totalorder %v579, 1
        %vm582 = vcmp.eq.s32.totalorder %v580, 1
        %v583 = vsel %vm581, 0.0, %v576
        %v584 = vsel %vm582, 0.0, %v575
        %v585 = vadd.f32 %v568, %v583
        %v586 = vadd.f32 %v569, %v584
        %v587 = vmul.f32 %v585, %v320
        %v588 = vmul.f32 %v586, %v335
        %v589 = vmul.f32 %v587, %v587
        %v590 = vmul.f32 %v588, %v588
        %v593 = vrot.slane %v589, 7
        %v594 = vrot.slane %v590, 7
        %v597 = vsub.f32 %v587, %v593
        %v598 = vsub.f32 %v588, %v594
        %v599 = vmax.f32 %v597, 0.0
        %v600 = vmax.f32 %v598, 0.0
        %v601 = vadd.f32 %v599, 1e-12
        %v602 = vadd.f32 %v600, 1e-12
        %v603 = vrsqrt.pop %v601
        %v604 = vmul.f32 %v603, %v601
        %v605 = vmul.f32 %v604, %v603
        %v606 = vmul.f32 0.5, %v605
        %v607 = vsub.f32 1.5, %v606
        %v608 = vmul.f32 %v603, %v607
        %vm609 = vweird.f32 %v601
        %vm610 = vweird.f32 %v603
        %vm611 = vmor %vm609, %vm610
        %v612 = vsel %vm611, %v603, %v608
        %v613 = vrsqrt.pop %v602
        %v614 = vmul.f32 %v613, %v602
        %v615 = vmul.f32 %v614, %v613
        %v616 = vmul.f32 0.5, %v615
        %v617 = vsub.f32 1.5, %v616
        %v618 = vmul.f32 %v613, %v617
        %vm619 = vweird.f32 %v602
        %vm620 = vweird.f32 %v613
        %vm621 = vmor %vm619, %vm620
        %v622 = vsel %vm621, %v613, %v618
        %623 = vset.pattern.permute.xlu0 1
        %624 = vperm.xlu0 %623, %v336
        %v625 = vpop.permute.xlu0 %624
        %627 = vset.pattern.permute.xlu0 1
        %628 = vperm.xlu0 %627, %v337
        %v629 = vpop.permute.xlu0 %628
        %631 = vset.pattern.permute.xlu0 1
        %632 = vperm.xlu0 %631, %v338
        %v633 = vpop.permute.xlu0 %632
        %635 = vset.pattern.permute.xlu0 1
        %636 = vperm.xlu0 %635, %v339
        %v637 = vpop.permute.xlu0 %636
        %v639 = vperm.slane %v612, 1
        %v640 = vperm.slane %v622, 1
        %v641 = vmul.f32 %v625, %v639
        %v642 = vmul.f32 %v625, %v640
        %v643 = vmul.f32 %v629, %v639
        %v644 = vmul.f32 %v629, %v640
        %v645 = vmul.f32 %v633, %v639
        %v646 = vmul.f32 %v633, %v640
        %v647 = vmul.f32 %v637, %v639
        %v648 = vmul.f32 %v637, %v640
        %v649 = vperm.slane %v587, 0
        %v650 = vperm.slane %v588, 0
        %v651 = vmul.f32 %v649, %v641
        %v652 = vmul.f32 %v650, %v642
        %v653 = vmul.f32 %v649, %v643
        %v654 = vmul.f32 %v650, %v644
        %v655 = vmul.f32 %v649, %v645
        %v656 = vmul.f32 %v650, %v646
        %v657 = vmul.f32 %v649, %v647
        %v658 = vmul.f32 %v650, %v648
        %659 = vset.pattern.permute.xlu0 2
        %660 = vperm.xlu0 %659, %v336
        %v661 = vpop.permute.xlu0 %660
        %663 = vset.pattern.permute.xlu0 2
        %664 = vperm.xlu0 %663, %v337
        %v665 = vpop.permute.xlu0 %664
        %667 = vset.pattern.permute.xlu0 2
        %668 = vperm.xlu0 %667, %v338
        %v669 = vpop.permute.xlu0 %668
        %671 = vset.pattern.permute.xlu0 2
        %672 = vperm.xlu0 %671, %v339
        %v673 = vpop.permute.xlu0 %672
        %v675 = vsub.f32 %v661, %v651
        %v676 = vsub.f32 %v661, %v652
        %v677 = vsub.f32 %v665, %v653
        %v678 = vsub.f32 %v665, %v654
        %v679 = vsub.f32 %v669, %v655
        %v680 = vsub.f32 %v669, %v656
        %v681 = vsub.f32 %v673, %v657
        %v682 = vsub.f32 %v673, %v658
        %v683 = vmul.f32 %v393, %v641
        %v684 = vmul.f32 %v412, %v642
        %v685 = vmul.f32 %v395, %v643
        %v686 = vmul.f32 %v414, %v644
        %v687 = vmul.f32 %v398, %v645
        %v688 = vmul.f32 %v417, %v646
        %v689 = vmul.f32 %v400, %v647
        %v690 = vmul.f32 %v419, %v648
        %v691 = vadd.f32 %v683, %v675
        %v692 = vadd.f32 %v684, %v676
        %v693 = vadd.f32 %v685, %v677
        %v694 = vadd.f32 %v686, %v678
        %v695 = vadd.f32 %v687, %v679
        %v696 = vadd.f32 %v688, %v680
        %v697 = vadd.f32 %v689, %v681
        %v698 = vadd.f32 %v690, %v682
        %699 = vrot.lane.b32.xlu0 %v691, 2
        %v700 = vpop.permute.xlu0 %699
        %701 = vrot.lane.b32.xlu0 %v693, 2
        %v702 = vpop.permute.xlu0 %701
        %703 = vrot.lane.b32.xlu0 %v695, 2
        %v704 = vpop.permute.xlu0 %703
        %705 = vrot.lane.b32.xlu0 %v697, 2
        %v706 = vpop.permute.xlu0 %705
        %707 = vrot.lane.b32.xlu0 %v692, 2
        %v708 = vpop.permute.xlu0 %707
        %709 = vrot.lane.b32.xlu0 %v694, 2
        %v710 = vpop.permute.xlu0 %709
        %711 = vrot.lane.b32.xlu0 %v696, 2
        %v712 = vpop.permute.xlu0 %711
        %713 = vrot.lane.b32.xlu0 %v698, 2
        %v714 = vpop.permute.xlu0 %713
        %v715 = vsel %vm489, %v700, %v708
        %v716 = vsel %vm489, %v702, %v710
        %v717 = vsel %vm489, %v704, %v712
        %v718 = vsel %vm489, %v706, %v714
        %v719 = vsel %vm489, %v708, %v700
        %v720 = vsel %vm489, %v710, %v702
        %v721 = vsel %vm489, %v712, %v704
        %v722 = vsel %vm489, %v714, %v706
        %v723 = vsel %vm496, 0.0, %v719
        %v724 = vsel %vm497, 0.0, %v715
        %v725 = vsel %vm496, 0.0, %v720
        %v726 = vsel %vm497, 0.0, %v716
        %v727 = vsel %vm496, 0.0, %v721
        %v728 = vsel %vm497, 0.0, %v717
        %v729 = vsel %vm496, 0.0, %v722
        %v730 = vsel %vm497, 0.0, %v718
        %v731 = vpack.c.bf16 %v724, %v723
        %v732 = vpack.c.bf16 %v726, %v725
        %v733 = vpack.c.bf16 %v728, %v727
        %v734 = vpack.c.bf16 %v730, %v729
        %735 = vrot.lane.b32.xlu0 %v691, 1
        %v736 = vpop.permute.xlu0 %735
        %737 = vrot.lane.b32.xlu0 %v693, 1
        %v738 = vpop.permute.xlu0 %737
        %739 = vrot.lane.b32.xlu0 %v695, 1
        %v740 = vpop.permute.xlu0 %739
        %741 = vrot.lane.b32.xlu0 %v697, 1
        %v742 = vpop.permute.xlu0 %741
        %743 = vrot.lane.b32.xlu0 %v692, 1
        %v744 = vpop.permute.xlu0 %743
        %745 = vrot.lane.b32.xlu0 %v694, 1
        %v746 = vpop.permute.xlu0 %745
        %747 = vrot.lane.b32.xlu0 %v696, 1
        %v748 = vpop.permute.xlu0 %747
        %749 = vrot.lane.b32.xlu0 %v698, 1
        %v750 = vpop.permute.xlu0 %749
        %v751 = vsel %vm472, %v736, %v744
        %v752 = vsel %vm472, %v738, %v746
        %v753 = vsel %vm472, %v740, %v748
        %v754 = vsel %vm472, %v742, %v750
        %v755 = vsel %vm472, %v744, %v736
        %v756 = vsel %vm472, %v746, %v738
        %v757 = vsel %vm472, %v748, %v740
        %v758 = vsel %vm472, %v750, %v742
        %v759 = vsel %vm479, 0.0, %v755
        %v760 = vsel %vm480, 0.0, %v751
        %v761 = vsel %vm479, 0.0, %v756
        %v762 = vsel %vm480, 0.0, %v752
        %v763 = vsel %vm479, 0.0, %v757
        %v764 = vsel %vm480, 0.0, %v753
        %v765 = vsel %vm479, 0.0, %v758
        %v766 = vsel %vm480, 0.0, %v754
        %v767 = vpack.c.bf16 %v760, %v759
        %v768 = vpack.c.bf16 %v762, %v761
        %v769 = vpack.c.bf16 %v764, %v763
        %v770 = vpack.c.bf16 %v766, %v765
        %v771 = vpack.c.bf16 %v692, %v691
        %v772 = vpack.c.bf16 %v694, %v693
        %v773 = vpack.c.bf16 %v696, %v695
        %v774 = vpack.c.bf16 %v698, %v697
        %v779 = vunpack.c.l.b16 %v731
        %v780 = vunpack.c.h.b16 %v731
        %v781 = vunpack.c.l.b16 %v732
        %v782 = vunpack.c.h.b16 %v732
        %v783 = vunpack.c.l.b16 %v733
        %v784 = vunpack.c.h.b16 %v733
        %v785 = vunpack.c.l.b16 %v734
        %v786 = vunpack.c.h.b16 %v734
        %v787 = vpack.c.b16 %v781, %v779
        %v788 = vpack.c.b16 %v782, %v780
        %v789 = vpack.c.b16 %v785, %v783
        %v790 = vpack.c.b16 %v786, %v784
        %v799 = vunpack.c.l.b16 %v767
        %v800 = vunpack.c.h.b16 %v767
        %v801 = vunpack.c.l.b16 %v768
        %v802 = vunpack.c.h.b16 %v768
        %v803 = vunpack.c.l.b16 %v769
        %v804 = vunpack.c.h.b16 %v769
        %v805 = vunpack.c.l.b16 %v770
        %v806 = vunpack.c.h.b16 %v770
        %v807 = vpack.c.b16 %v801, %v799
        %v808 = vpack.c.b16 %v802, %v800
        %v809 = vpack.c.b16 %v805, %v803
        %v810 = vpack.c.b16 %v806, %v804
        %v819 = vunpack.c.l.b16 %v771
        %v820 = vunpack.c.h.b16 %v771
        %v821 = vunpack.c.l.b16 %v772
        %v822 = vunpack.c.h.b16 %v772
        %v823 = vunpack.c.l.b16 %v773
        %v824 = vunpack.c.h.b16 %v773
        %v825 = vunpack.c.l.b16 %v774
        %v826 = vunpack.c.h.b16 %v774
        %v827 = vpack.c.b16 %v821, %v819
        %v828 = vpack.c.b16 %v822, %v820
        %v829 = vpack.c.b16 %v825, %v823
        %v830 = vpack.c.b16 %v826, %v824
        %v835 = vld [vmem:[%s3] sm:$0xf]
        %v836 = vld [vmem:[%s3 + $0x4] sm:$0xf]
        %v837 = vld [vmem:[%s3 + $0x8] sm:$0xf]
        %v838 = vld [vmem:[%s3 + $0xc] sm:$0xf]
        %v839 = vld [vmem:[%s4] sm:$0xff]
        %v840 = vld [vmem:[%s4 + $0x8] sm:$0xff]
        %v841 = vld [vmem:[%s4 + $0x10] sm:$0xff]
        %v842 = vld [vmem:[%s4 + $0x18] sm:$0xff]
        %844 = vset.pattern.permute.xlu0 0
        %845 = vperm.xlu0 %844, %v839
        %v846 = vpop.permute.xlu0 %845
        %849 = vset.pattern.permute.xlu0 0
        %850 = vperm.xlu0 %849, %v840
        %v851 = vpop.permute.xlu0 %850
        %854 = vset.pattern.permute.xlu0 0
        %855 = vperm.xlu0 %854, %v841
        %v856 = vpop.permute.xlu0 %855
        %859 = vset.pattern.permute.xlu0 0
        %860 = vperm.xlu0 %859, %v842
        %v861 = vpop.permute.xlu0 %860
        %v867 = vunpack.c.l.b16 %v835
        %v868 = vunpack.c.l.b16 %v836
        %v869 = vunpack.c.l.b16 %v837
        %v870 = vunpack.c.l.b16 %v838
        %v871 = vpack.c.b16 %v868, %v867
        %v872 = vpack.c.b16 %v870, %v869
        %875 = vmatpush.bf16.msra.mxu0 0
        %876 = vmatpush.bf16.msra.mxu0 0
        %877 = vmatpush.bf16.msra.mxu0 %v829
        %878 = vmatpush.bf16.msra.mxu0 %v827
        %879 = vmatpush.bf16.msra.mxu0 %v809
        %880 = vmatpush.bf16.msra.mxu0 %v807
        %881 = vmatpush.bf16.msra.mxu0 %v789
        %882 = vmatpush.bf16.msra.mxu0 %v787
        %883 = vmatmul.bf16.gmra.mxu0 %v871
        %v884 = vpop.f32.mrf.mxu0
        %v885 = vadd.f32 %v846, %v884
        %v886 = vpop.f32.mrf.mxu0
        %v887 = vadd.f32 %v851, %v886
        %888 = vmatmul.bf16.gmra.mxu0 %v872
        %v889 = vpop.f32.mrf.mxu0
        %v890 = vadd.f32 %v856, %v889
        %v891 = vpop.f32.mrf.mxu0
        %v892 = vadd.f32 %v861, %v891
        %893 = vdwg.mxu0
        %894 = vmatpush.bf16.msra.mxu0 0
        %895 = vmatpush.bf16.msra.mxu0 0
        %896 = vmatpush.bf16.msra.mxu0 %v830
        %897 = vmatpush.bf16.msra.mxu0 %v828
        %898 = vmatpush.bf16.msra.mxu0 %v810
        %899 = vmatpush.bf16.msra.mxu0 %v808
        %900 = vmatpush.bf16.msra.mxu0 %v790
        %901 = vmatpush.bf16.msra.mxu0 %v788
        %902 = vmatmul.bf16.gmra.mxu0 %v871
        %v903 = vpop.f32.mrf.mxu0
        %v904 = vadd.f32 %v846, %v903
        %v905 = vpop.f32.mrf.mxu0
        %v906 = vadd.f32 %v851, %v905
        %907 = vmatmul.bf16.gmra.mxu0 %v872
        %v908 = vpop.f32.mrf.mxu0
        %v909 = vadd.f32 %v856, %v908
        %v910 = vpop.f32.mrf.mxu0
        %v911 = vadd.f32 %v861, %v910
        %912 = vdwg.mxu0
        %v913 = vadd.f32 %v885, %v291
        %v914 = vadd.f32 %v904, %v292
        %v915 = vadd.f32 %v887, %v293
        %v916 = vadd.f32 %v906, %v294
        %v917 = vadd.f32 %v890, 0.0
        %v918 = vadd.f32 %v909, 0.0
        %v919 = vadd.f32 %v892, 0.0
        %v920 = vadd.f32 %v911, 0.0
        %s921 = scalar_lea.vmem %s2, 32
        %v922 = vld [vmem:[%s921] sm:$0xff]
        %v923 = vld [vmem:[%s921 + $0x8] sm:$0xff]
        %v924 = vld [vmem:[%s921 + $0x10] sm:$0xff]
        %v925 = vld [vmem:[%s921 + $0x18] sm:$0xff]
        %s926 = scalar_lea.vmem %s1, 16
        %v927 = vld [vmem:[%s926] sm:$0xf]
        %v928 = vld [vmem:[%s926 + $0x4] sm:$0xf]
        %v929 = vld [vmem:[%s926 + $0x8] sm:$0xf]
        %v930 = vld [vmem:[%s926 + $0xc] sm:$0xf]
        %v931 = vpack.c.bf16 %v915, %v913
        %v932 = vpack.c.bf16 %v916, %v914
        %934 = vset.pattern.permute.xlu0 0
        %935 = vperm.xlu0 %934, %v922
        %v936 = vpop.permute.xlu0 %935
        %939 = vset.pattern.permute.xlu0 0
        %940 = vperm.xlu0 %939, %v923
        %v941 = vpop.permute.xlu0 %940
        %944 = vset.pattern.permute.xlu0 0
        %945 = vperm.xlu0 %944, %v924
        %v946 = vpop.permute.xlu0 %945
        %949 = vset.pattern.permute.xlu0 0
        %950 = vperm.xlu0 %949, %v925
        %v951 = vpop.permute.xlu0 %950
        %v957 = vunpack.c.l.b16 %v927
        %v958 = vunpack.c.l.b16 %v928
        %v959 = vunpack.c.l.b16 %v929
        %v960 = vunpack.c.l.b16 %v930
        %v961 = vpack.c.b16 %v958, %v957
        %v962 = vpack.c.b16 %v960, %v959
        %v964 = vsel %vm376, %v961, 0
        %v967 = vsel %vm376, %v962, 0
        %969 = vmatpush.bf16.msra.mxu0 0
        %970 = vmatpush.bf16.msra.mxu0 0
        %971 = vmatpush.bf16.msra.mxu0 0
        %972 = vmatpush.bf16.msra.mxu0 0
        %973 = vmatpush.bf16.msra.mxu0 0
        %974 = vmatpush.bf16.msra.mxu0 0
        %975 = vmatpush.bf16.msra.mxu0 0
        %976 = vmatpush.bf16.msra.mxu0 %v931
        %977 = vmatmul.bf16.gmra.mxu0 %v964
        %v978 = vpop.f32.mrf.mxu0
        %v979 = vadd.f32 %v936, %v978
        %v980 = vpop.f32.mrf.mxu0
        %v981 = vadd.f32 %v941, %v980
        %982 = vmatmul.bf16.gmra.mxu0 %v967
        %v983 = vpop.f32.mrf.mxu0
        %v984 = vadd.f32 %v946, %v983
        %v985 = vpop.f32.mrf.mxu0
        %v986 = vadd.f32 %v951, %v985
        %987 = vdwg.mxu0
        %988 = vmatpush.bf16.msra.mxu0 0
        %989 = vmatpush.bf16.msra.mxu0 0
        %990 = vmatpush.bf16.msra.mxu0 0
        %991 = vmatpush.bf16.msra.mxu0 0
        %992 = vmatpush.bf16.msra.mxu0 0
        %993 = vmatpush.bf16.msra.mxu0 0
        %994 = vmatpush.bf16.msra.mxu0 0
        %995 = vmatpush.bf16.msra.mxu0 %v932
        %996 = vmatmul.bf16.gmra.mxu0 %v964
        %v997 = vpop.f32.mrf.mxu0
        %v998 = vadd.f32 %v936, %v997
        %v999 = vpop.f32.mrf.mxu0
        %v1000 = vadd.f32 %v941, %v999
        %1001 = vmatmul.bf16.gmra.mxu0 %v967
        %v1002 = vpop.f32.mrf.mxu0
        %v1003 = vadd.f32 %v946, %v1002
        %v1004 = vpop.f32.mrf.mxu0
        %v1005 = vadd.f32 %v951, %v1004
        %1006 = vdwg.mxu0
        %v1007 = vadd.f32 %v979, %v981
        %v1008 = vadd.f32 %v1007, %v984
        %v1009 = vadd.f32 %v1008, %v986
        %v1010 = vrot.slane %v1009, 4
        %v1011 = vadd.f32 %v1009, %v1010
        %v1012 = vrot.slane %v1011, 2
        %v1013 = vadd.f32 %v1011, %v1012
        %v1014 = vrot.slane %v1013, 1
        %v1015 = vadd.f32 %v1013, %v1014
        %v1016 = vadd.f32 %v998, %v1000
        %v1017 = vadd.f32 %v1016, %v1003
        %v1018 = vadd.f32 %v1017, %v1005
        %v1019 = vrot.slane %v1018, 4
        %v1020 = vadd.f32 %v1018, %v1019
        %v1021 = vrot.slane %v1020, 2
        %v1022 = vadd.f32 %v1020, %v1021
        %v1023 = vrot.slane %v1022, 1
        %v1024 = vadd.f32 %v1022, %v1023
        %v1025 = vmul.f32 %v979, %v979
        %v1026 = vmul.f32 %v998, %v998
        %v1027 = vmul.f32 %v981, %v981
        %v1028 = vmul.f32 %v1000, %v1000
        %v1029 = vmul.f32 %v984, %v984
        %v1030 = vmul.f32 %v1003, %v1003
        %v1031 = vmul.f32 %v986, %v986
        %v1032 = vmul.f32 %v1005, %v1005
        %v1033 = vadd.f32 %v1025, %v1027
        %v1034 = vadd.f32 %v1033, %v1029
        %v1035 = vadd.f32 %v1034, %v1031
        %v1036 = vrot.slane %v1035, 4
        %v1037 = vadd.f32 %v1035, %v1036
        %v1038 = vrot.slane %v1037, 2
        %v1039 = vadd.f32 %v1037, %v1038
        %v1040 = vrot.slane %v1039, 1
        %v1041 = vadd.f32 %v1039, %v1040
        %v1042 = vadd.f32 %v1026, %v1028
        %v1043 = vadd.f32 %v1042, %v1030
        %v1044 = vadd.f32 %v1043, %v1032
        %v1045 = vrot.slane %v1044, 4
        %v1046 = vadd.f32 %v1044, %v1045
        %v1047 = vrot.slane %v1046, 2
        %v1048 = vadd.f32 %v1046, %v1047
        %v1049 = vrot.slane %v1048, 1
        %v1050 = vadd.f32 %v1048, %v1049
        %v1051 = vsel %vm465, %v1015, %v1041
        %v1052 = vsel %vm465, %v1024, %v1050
        %1053 = vrot.lane.b32.xlu0 %v1051, 1
        %v1054 = vpop.permute.xlu0 %1053
        %1055 = vrot.lane.b32.xlu0 %v1052, 1
        %v1056 = vpop.permute.xlu0 %1055
        %v1057 = vsel %vm472, %v1054, %v1056
        %v1058 = vsel %vm472, %v1056, %v1054
        %v1059 = vsel %vm479, 0.0, %v1058
        %v1060 = vsel %vm480, 0.0, %v1057
        %v1061 = vadd.f32 %v1051, %v1059
        %v1062 = vadd.f32 %v1052, %v1060
        %1063 = vrot.lane.b32.xlu0 %v1061, 2
        %v1064 = vpop.permute.xlu0 %1063
        %1065 = vrot.lane.b32.xlu0 %v1062, 2
        %v1066 = vpop.permute.xlu0 %1065
        %v1067 = vsel %vm489, %v1064, %v1066
        %v1068 = vsel %vm489, %v1066, %v1064
        %v1069 = vsel %vm496, 0.0, %v1068
        %v1070 = vsel %vm497, 0.0, %v1067
        %v1071 = vadd.f32 %v1061, %v1069
        %v1072 = vadd.f32 %v1062, %v1070
        %1073 = vrot.lane.b32.xlu0 %v1071, 4
        %v1074 = vpop.permute.xlu0 %1073
        %1075 = vrot.lane.b32.xlu0 %v1072, 4
        %v1076 = vpop.permute.xlu0 %1075
        %v1077 = vsel %vm506, %v1074, %v1076
        %v1078 = vsel %vm506, %v1076, %v1074
        %v1079 = vsel %vm513, 0.0, %v1078
        %v1080 = vsel %vm514, 0.0, %v1077
        %v1081 = vadd.f32 %v1071, %v1079
        %v1082 = vadd.f32 %v1072, %v1080
        %1083 = vrot.lane.b32.xlu0 %v1081, 8
        %v1084 = vpop.permute.xlu0 %1083
        %1085 = vrot.lane.b32.xlu0 %v1082, 8
        %v1086 = vpop.permute.xlu0 %1085
        %v1087 = vsel %vm523, %v1084, %v1086
        %v1088 = vsel %vm523, %v1086, %v1084
        %v1089 = vsel %vm530, 0.0, %v1088
        %v1090 = vsel %vm531, 0.0, %v1087
        %v1091 = vadd.f32 %v1081, %v1089
        %v1092 = vadd.f32 %v1082, %v1090
        %1093 = vrot.lane.b32.xlu0 %v1091, 16
        %v1094 = vpop.permute.xlu0 %1093
        %1095 = vrot.lane.b32.xlu0 %v1092, 16
        %v1096 = vpop.permute.xlu0 %1095
        %v1097 = vsel %vm540, %v1094, %v1096
        %v1098 = vsel %vm540, %v1096, %v1094
        %v1099 = vsel %vm547, 0.0, %v1098
        %v1100 = vsel %vm548, 0.0, %v1097
        %v1101 = vadd.f32 %v1091, %v1099
        %v1102 = vadd.f32 %v1092, %v1100
        %1103 = vrot.lane.b32.xlu0 %v1101, 32
        %v1104 = vpop.permute.xlu0 %1103
        %1105 = vrot.lane.b32.xlu0 %v1102, 32
        %v1106 = vpop.permute.xlu0 %1105
        %v1107 = vsel %vm557, %v1104, %v1106
        %v1108 = vsel %vm557, %v1106, %v1104
        %v1109 = vsel %vm564, 0.0, %v1108
        %v1110 = vsel %vm565, 0.0, %v1107
        %v1111 = vadd.f32 %v1101, %v1109
        %v1112 = vadd.f32 %v1102, %v1110
        %1113 = vrot.lane.b32.xlu0 %v1111, 64
        %v1114 = vpop.permute.xlu0 %1113
        %1115 = vrot.lane.b32.xlu0 %v1112, 64
        %v1116 = vpop.permute.xlu0 %1115
        %v1117 = vsel %vm574, %v1114, %v1116
        %v1118 = vsel %vm574, %v1116, %v1114
        %v1119 = vsel %vm581, 0.0, %v1118
        %v1120 = vsel %vm582, 0.0, %v1117
        %v1121 = vadd.f32 %v1111, %v1119
        %v1122 = vadd.f32 %v1112, %v1120
        %v1123 = vmul.f32 %v1121, %v320
        %v1124 = vmul.f32 %v1122, %v335
        %v1125 = vmul.f32 %v1123, %v1123
        %v1126 = vmul.f32 %v1124, %v1124
        %v1129 = vrot.slane %v1125, 7
        %v1130 = vrot.slane %v1126, 7
        %v1133 = vsub.f32 %v1123, %v1129
        %v1134 = vsub.f32 %v1124, %v1130
        %v1135 = vmax.f32 %v1133, 0.0
        %v1136 = vmax.f32 %v1134, 0.0
        %v1137 = vadd.f32 %v1135, 1e-12
        %v1138 = vadd.f32 %v1136, 1e-12
        %v1139 = vrsqrt.pop %v1137
        %v1140 = vmul.f32 %v1139, %v1137
        %v1141 = vmul.f32 %v1140, %v1139
        %v1142 = vmul.f32 0.5, %v1141
        %v1143 = vsub.f32 1.5, %v1142
        %v1144 = vmul.f32 %v1139, %v1143
        %vm1145 = vweird.f32 %v1137
        %vm1146 = vweird.f32 %v1139
        %vm1147 = vmor %vm1145, %vm1146
        %v1148 = vsel %vm1147, %v1139, %v1144
        %v1149 = vrsqrt.pop %v1138
        %v1150 = vmul.f32 %v1149, %v1138
        %v1151 = vmul.f32 %v1150, %v1149
        %v1152 = vmul.f32 0.5, %v1151
        %v1153 = vsub.f32 1.5, %v1152
        %v1154 = vmul.f32 %v1149, %v1153
        %vm1155 = vweird.f32 %v1138
        %vm1156 = vweird.f32 %v1149
        %vm1157 = vmor %vm1155, %vm1156
        %v1158 = vsel %vm1157, %v1149, %v1154
        %1159 = vset.pattern.permute.xlu0 1
        %1160 = vperm.xlu0 %1159, %v922
        %v1161 = vpop.permute.xlu0 %1160
        %1163 = vset.pattern.permute.xlu0 1
        %1164 = vperm.xlu0 %1163, %v923
        %v1165 = vpop.permute.xlu0 %1164
        %1167 = vset.pattern.permute.xlu0 1
        %1168 = vperm.xlu0 %1167, %v924
        %v1169 = vpop.permute.xlu0 %1168
        %1171 = vset.pattern.permute.xlu0 1
        %1172 = vperm.xlu0 %1171, %v925
        %v1173 = vpop.permute.xlu0 %1172
        %v1175 = vperm.slane %v1148, 1
        %v1176 = vperm.slane %v1158, 1
        %v1177 = vmul.f32 %v1161, %v1175
        %v1178 = vmul.f32 %v1161, %v1176
        %v1179 = vmul.f32 %v1165, %v1175
        %v1180 = vmul.f32 %v1165, %v1176
        %v1181 = vmul.f32 %v1169, %v1175
        %v1182 = vmul.f32 %v1169, %v1176
        %v1183 = vmul.f32 %v1173, %v1175
        %v1184 = vmul.f32 %v1173, %v1176
        %v1185 = vperm.slane %v1123, 0
        %v1186 = vperm.slane %v1124, 0
        %v1187 = vmul.f32 %v1185, %v1177
        %v1188 = vmul.f32 %v1186, %v1178
        %v1189 = vmul.f32 %v1185, %v1179
        %v1190 = vmul.f32 %v1186, %v1180
        %v1191 = vmul.f32 %v1185, %v1181
        %v1192 = vmul.f32 %v1186, %v1182
        %v1193 = vmul.f32 %v1185, %v1183
        %v1194 = vmul.f32 %v1186, %v1184
        %1195 = vset.pattern.permute.xlu0 2
        %1196 = vperm.xlu0 %1195, %v922
        %v1197 = vpop.permute.xlu0 %1196
        %1199 = vset.pattern.permute.xlu0 2
        %1200 = vperm.xlu0 %1199, %v923
        %v1201 = vpop.permute.xlu0 %1200
        %1203 = vset.pattern.permute.xlu0 2
        %1204 = vperm.xlu0 %1203, %v924
        %v1205 = vpop.permute.xlu0 %1204
        %1207 = vset.pattern.permute.xlu0 2
        %1208 = vperm.xlu0 %1207, %v925
        %v1209 = vpop.permute.xlu0 %1208
        %v1211 = vsub.f32 %v1197, %v1187
        %v1212 = vsub.f32 %v1197, %v1188
        %v1213 = vsub.f32 %v1201, %v1189
        %v1214 = vsub.f32 %v1201, %v1190
        %v1215 = vsub.f32 %v1205, %v1191
        %v1216 = vsub.f32 %v1205, %v1192
        %v1217 = vsub.f32 %v1209, %v1193
        %v1218 = vsub.f32 %v1209, %v1194
        %v1219 = vmul.f32 %v979, %v1177
        %v1220 = vmul.f32 %v998, %v1178
        %v1221 = vmul.f32 %v981, %v1179
        %v1222 = vmul.f32 %v1000, %v1180
        %v1223 = vmul.f32 %v984, %v1181
        %v1224 = vmul.f32 %v1003, %v1182
        %v1225 = vmul.f32 %v986, %v1183
        %v1226 = vmul.f32 %v1005, %v1184
        %v1227 = vadd.f32 %v1219, %v1211
        %v1228 = vadd.f32 %v1220, %v1212
        %v1229 = vadd.f32 %v1221, %v1213
        %v1230 = vadd.f32 %v1222, %v1214
        %v1231 = vadd.f32 %v1223, %v1215
        %v1232 = vadd.f32 %v1224, %v1216
        %v1233 = vadd.f32 %v1225, %v1217
        %v1234 = vadd.f32 %v1226, %v1218
        %1235 = vrot.lane.b32.xlu0 %v1227, 4
        %v1236 = vpop.permute.xlu0 %1235
        %1237 = vrot.lane.b32.xlu0 %v1229, 4
        %v1238 = vpop.permute.xlu0 %1237
        %1239 = vrot.lane.b32.xlu0 %v1231, 4
        %v1240 = vpop.permute.xlu0 %1239
        %1241 = vrot.lane.b32.xlu0 %v1233, 4
        %v1242 = vpop.permute.xlu0 %1241
        %1243 = vrot.lane.b32.xlu0 %v1228, 4
        %v1244 = vpop.permute.xlu0 %1243
        %1245 = vrot.lane.b32.xlu0 %v1230, 4
        %v1246 = vpop.permute.xlu0 %1245
        %1247 = vrot.lane.b32.xlu0 %v1232, 4
        %v1248 = vpop.permute.xlu0 %1247
        %1249 = vrot.lane.b32.xlu0 %v1234, 4
        %v1250 = vpop.permute.xlu0 %1249
        %v1251 = vsel %vm506, %v1236, %v1244
        %v1252 = vsel %vm506, %v1238, %v1246
        %v1253 = vsel %vm506, %v1240, %v1248
        %v1254 = vsel %vm506, %v1242, %v1250
        %v1255 = vsel %vm506, %v1244, %v1236
        %v1256 = vsel %vm506, %v1246, %v1238
        %v1257 = vsel %vm506, %v1248, %v1240
        %v1258 = vsel %vm506, %v1250, %v1242
        %v1259 = vsel %vm513, 0.0, %v1255
        %v1260 = vsel %vm514, 0.0, %v1251
        %v1261 = vsel %vm513, 0.0, %v1256
        %v1262 = vsel %vm514, 0.0, %v1252
        %v1263 = vsel %vm513, 0.0, %v1257
        %v1264 = vsel %vm514, 0.0, %v1253
        %v1265 = vsel %vm513, 0.0, %v1258
        %v1266 = vsel %vm514, 0.0, %v1254
        %v1267 = vpack.c.bf16 %v1260, %v1259
        %v1268 = vpack.c.bf16 %v1262, %v1261
        %v1269 = vpack.c.bf16 %v1264, %v1263
        %v1270 = vpack.c.bf16 %v1266, %v1265
        %1271 = vrot.lane.b32.xlu0 %v1227, 2
        %v1272 = vpop.permute.xlu0 %1271
        %1273 = vrot.lane.b32.xlu0 %v1229, 2
        %v1274 = vpop.permute.xlu0 %1273
        %1275 = vrot.lane.b32.xlu0 %v1231, 2
        %v1276 = vpop.permute.xlu0 %1275
        %1277 = vrot.lane.b32.xlu0 %v1233, 2
        %v1278 = vpop.permute.xlu0 %1277
        %1279 = vrot.lane.b32.xlu0 %v1228, 2
        %v1280 = vpop.permute.xlu0 %1279
        %1281 = vrot.lane.b32.xlu0 %v1230, 2
        %v1282 = vpop.permute.xlu0 %1281
        %1283 = vrot.lane.b32.xlu0 %v1232, 2
        %v1284 = vpop.permute.xlu0 %1283
        %1285 = vrot.lane.b32.xlu0 %v1234, 2
        %v1286 = vpop.permute.xlu0 %1285
        %v1287 = vsel %vm489, %v1272, %v1280
        %v1288 = vsel %vm489, %v1274, %v1282
        %v1289 = vsel %vm489, %v1276, %v1284
        %v1290 = vsel %vm489, %v1278, %v1286
        %v1291 = vsel %vm489, %v1280, %v1272
        %v1292 = vsel %vm489, %v1282, %v1274
        %v1293 = vsel %vm489, %v1284, %v1276
        %v1294 = vsel %vm489, %v1286, %v1278
        %v1295 = vsel %vm496, 0.0, %v1291
        %v1296 = vsel %vm497, 0.0, %v1287
        %v1297 = vsel %vm496, 0.0, %v1292
        %v1298 = vsel %vm497, 0.0, %v1288
        %v1299 = vsel %vm496, 0.0, %v1293
        %v1300 = vsel %vm497, 0.0, %v1289
        %v1301 = vsel %vm496, 0.0, %v1294
        %v1302 = vsel %vm497, 0.0, %v1290
        %v1303 = vpack.c.bf16 %v1296, %v1295
        %v1304 = vpack.c.bf16 %v1298, %v1297
        %v1305 = vpack.c.bf16 %v1300, %v1299
        %v1306 = vpack.c.bf16 %v1302, %v1301
        %v1307 = vpack.c.bf16 %v1228, %v1227
        %v1308 = vpack.c.bf16 %v1230, %v1229
        %v1309 = vpack.c.bf16 %v1232, %v1231
        %v1310 = vpack.c.bf16 %v1234, %v1233
        %v1315 = vunpack.c.l.b16 %v1267
        %v1316 = vunpack.c.h.b16 %v1267
        %v1317 = vunpack.c.l.b16 %v1268
        %v1318 = vunpack.c.h.b16 %v1268
        %v1319 = vunpack.c.l.b16 %v1269
        %v1320 = vunpack.c.h.b16 %v1269
        %v1321 = vunpack.c.l.b16 %v1270
        %v1322 = vunpack.c.h.b16 %v1270
        %v1323 = vpack.c.b16 %v1317, %v1315
        %v1324 = vpack.c.b16 %v1318, %v1316
        %v1325 = vpack.c.b16 %v1321, %v1319
        %v1326 = vpack.c.b16 %v1322, %v1320
        %v1335 = vunpack.c.l.b16 %v1303
        %v1336 = vunpack.c.h.b16 %v1303
        %v1337 = vunpack.c.l.b16 %v1304
        %v1338 = vunpack.c.h.b16 %v1304
        %v1339 = vunpack.c.l.b16 %v1305
        %v1340 = vunpack.c.h.b16 %v1305
        %v1341 = vunpack.c.l.b16 %v1306
        %v1342 = vunpack.c.h.b16 %v1306
        %v1343 = vpack.c.b16 %v1337, %v1335
        %v1344 = vpack.c.b16 %v1338, %v1336
        %v1345 = vpack.c.b16 %v1341, %v1339
        %v1346 = vpack.c.b16 %v1342, %v1340
        %v1355 = vunpack.c.l.b16 %v1307
        %v1356 = vunpack.c.h.b16 %v1307
        %v1357 = vunpack.c.l.b16 %v1308
        %v1358 = vunpack.c.h.b16 %v1308
        %v1359 = vunpack.c.l.b16 %v1309
        %v1360 = vunpack.c.h.b16 %v1309
        %v1361 = vunpack.c.l.b16 %v1310
        %v1362 = vunpack.c.h.b16 %v1310
        %v1363 = vpack.c.b16 %v1357, %v1355
        %v1364 = vpack.c.b16 %v1358, %v1356
        %v1365 = vpack.c.b16 %v1361, %v1359
        %v1366 = vpack.c.b16 %v1362, %v1360
        %s1371 = scalar_lea.vmem %s3, 16
        %v1372 = vld [vmem:[%s1371] sm:$0xf]
        %v1373 = vld [vmem:[%s1371 + $0x4] sm:$0xf]
        %v1374 = vld [vmem:[%s1371 + $0x8] sm:$0xf]
        %v1375 = vld [vmem:[%s1371 + $0xc] sm:$0xf]
        %s1376 = scalar_lea.vmem %s4, 32
        %v1377 = vld [vmem:[%s1376] sm:$0xff]
        %v1378 = vld [vmem:[%s1376 + $0x8] sm:$0xff]
        %v1379 = vld [vmem:[%s1376 + $0x10] sm:$0xff]
        %v1380 = vld [vmem:[%s1376 + $0x18] sm:$0xff]
        %1382 = vset.pattern.permute.xlu0 0
        %1383 = vperm.xlu0 %1382, %v1377
        %v1384 = vpop.permute.xlu0 %1383
        %1387 = vset.pattern.permute.xlu0 0
        %1388 = vperm.xlu0 %1387, %v1378
        %v1389 = vpop.permute.xlu0 %1388
        %1392 = vset.pattern.permute.xlu0 0
        %1393 = vperm.xlu0 %1392, %v1379
        %v1394 = vpop.permute.xlu0 %1393
        %1397 = vset.pattern.permute.xlu0 0
        %1398 = vperm.xlu0 %1397, %v1380
        %v1399 = vpop.permute.xlu0 %1398
        %v1405 = vunpack.c.l.b16 %v1372
        %v1406 = vunpack.c.l.b16 %v1373
        %v1407 = vunpack.c.l.b16 %v1374
        %v1408 = vunpack.c.l.b16 %v1375
        %v1409 = vpack.c.b16 %v1406, %v1405
        %v1410 = vpack.c.b16 %v1408, %v1407
        %1413 = vmatpush.bf16.msra.mxu0 0
        %1414 = vmatpush.bf16.msra.mxu0 0
        %1415 = vmatpush.bf16.msra.mxu0 %v1365
        %1416 = vmatpush.bf16.msra.mxu0 %v1363
        %1417 = vmatpush.bf16.msra.mxu0 %v1345
        %1418 = vmatpush.bf16.msra.mxu0 %v1343
        %1419 = vmatpush.bf16.msra.mxu0 %v1325
        %1420 = vmatpush.bf16.msra.mxu0 %v1323
        %1421 = vmatmul.bf16.gmra.mxu0 %v1409
        %v1422 = vpop.f32.mrf.mxu0
        %v1423 = vadd.f32 %v1384, %v1422
        %v1424 = vpop.f32.mrf.mxu0
        %v1425 = vadd.f32 %v1389, %v1424
        %1426 = vmatmul.bf16.gmra.mxu0 %v1410
        %v1427 = vpop.f32.mrf.mxu0
        %v1428 = vadd.f32 %v1394, %v1427
        %v1429 = vpop.f32.mrf.mxu0
        %v1430 = vadd.f32 %v1399, %v1429
        %1431 = vdwg.mxu0
        %1432 = vmatpush.bf16.msra.mxu0 0
        %1433 = vmatpush.bf16.msra.mxu0 0
        %1434 = vmatpush.bf16.msra.mxu0 %v1366
        %1435 = vmatpush.bf16.msra.mxu0 %v1364
        %1436 = vmatpush.bf16.msra.mxu0 %v1346
        %1437 = vmatpush.bf16.msra.mxu0 %v1344
        %1438 = vmatpush.bf16.msra.mxu0 %v1326
        %1439 = vmatpush.bf16.msra.mxu0 %v1324
        %1440 = vmatmul.bf16.gmra.mxu0 %v1409
        %v1441 = vpop.f32.mrf.mxu0
        %v1442 = vadd.f32 %v1384, %v1441
        %v1443 = vpop.f32.mrf.mxu0
        %v1444 = vadd.f32 %v1389, %v1443
        %1445 = vmatmul.bf16.gmra.mxu0 %v1410
        %v1446 = vpop.f32.mrf.mxu0
        %v1447 = vadd.f32 %v1394, %v1446
        %v1448 = vpop.f32.mrf.mxu0
        %v1449 = vadd.f32 %v1399, %v1448
        %1450 = vdwg.mxu0
        %v1451 = vadd.f32 %v1423, %v913
        %v1452 = vadd.f32 %v1442, %v914
        %v1453 = vadd.f32 %v1425, %v915
        %v1454 = vadd.f32 %v1444, %v916
        %v1455 = vadd.f32 %v917, %v1428
        %v1456 = vadd.f32 %v918, %v1447
        %v1457 = vadd.f32 %v919, %v1430
        %v1458 = vadd.f32 %v920, %v1449
        %s1459 = scalar_lea.vmem %s2, 64
        %v1460 = vld [vmem:[%s1459] sm:$0xff]
        %v1461 = vld [vmem:[%s1459 + $0x8] sm:$0xff]
        %v1462 = vld [vmem:[%s1459 + $0x10] sm:$0xff]
        %v1463 = vld [vmem:[%s1459 + $0x18] sm:$0xff]
        %s1464 = scalar_lea.vmem %s1, 32
        %v1465 = vld [vmem:[%s1464] sm:$0xf]
        %v1466 = vld [vmem:[%s1464 + $0x4] sm:$0xf]
        %v1467 = vld [vmem:[%s1464 + $0x8] sm:$0xf]
        %v1468 = vld [vmem:[%s1464 + $0xc] sm:$0xf]
        %v1469 = vpack.c.bf16 %v1453, %v1451
        %v1470 = vpack.c.bf16 %v1454, %v1452
        %1472 = vset.pattern.permute.xlu0 0
        %1473 = vperm.xlu0 %1472, %v1460
        %v1474 = vpop.permute.xlu0 %1473
        %1477 = vset.pattern.permute.xlu0 0
        %1478 = vperm.xlu0 %1477, %v1461
        %v1479 = vpop.permute.xlu0 %1478
        %1482 = vset.pattern.permute.xlu0 0
        %1483 = vperm.xlu0 %1482, %v1462
        %v1484 = vpop.permute.xlu0 %1483
        %1487 = vset.pattern.permute.xlu0 0
        %1488 = vperm.xlu0 %1487, %v1463
        %v1489 = vpop.permute.xlu0 %1488
        %v1495 = vunpack.c.l.b16 %v1465
        %v1496 = vunpack.c.l.b16 %v1466
        %v1497 = vunpack.c.l.b16 %v1467
        %v1498 = vunpack.c.l.b16 %v1468
        %v1499 = vpack.c.b16 %v1496, %v1495
        %v1500 = vpack.c.b16 %v1498, %v1497
        %v1502 = vsel %vm376, %v1499, 0
        %v1505 = vsel %vm376, %v1500, 0
        %1507 = vmatpush.bf16.msra.mxu0 0
        %1508 = vmatpush.bf16.msra.mxu0 0
        %1509 = vmatpush.bf16.msra.mxu0 0
        %1510 = vmatpush.bf16.msra.mxu0 0
        %1511 = vmatpush.bf16.msra.mxu0 0
        %1512 = vmatpush.bf16.msra.mxu0 0
        %1513 = vmatpush.bf16.msra.mxu0 0
        %1514 = vmatpush.bf16.msra.mxu0 %v1469
        %1515 = vmatmul.bf16.gmra.mxu0 %v1502
        %v1516 = vpop.f32.mrf.mxu0
        %v1517 = vadd.f32 %v1474, %v1516
        %v1518 = vpop.f32.mrf.mxu0
        %v1519 = vadd.f32 %v1479, %v1518
        %1520 = vmatmul.bf16.gmra.mxu0 %v1505
        %v1521 = vpop.f32.mrf.mxu0
        %v1522 = vadd.f32 %v1484, %v1521
        %v1523 = vpop.f32.mrf.mxu0
        %v1524 = vadd.f32 %v1489, %v1523
        %1525 = vdwg.mxu0
        %1526 = vmatpush.bf16.msra.mxu0 0
        %1527 = vmatpush.bf16.msra.mxu0 0
        %1528 = vmatpush.bf16.msra.mxu0 0
        %1529 = vmatpush.bf16.msra.mxu0 0
        %1530 = vmatpush.bf16.msra.mxu0 0
        %1531 = vmatpush.bf16.msra.mxu0 0
        %1532 = vmatpush.bf16.msra.mxu0 0
        %1533 = vmatpush.bf16.msra.mxu0 %v1470
        %1534 = vmatmul.bf16.gmra.mxu0 %v1502
        %v1535 = vpop.f32.mrf.mxu0
        %v1536 = vadd.f32 %v1474, %v1535
        %v1537 = vpop.f32.mrf.mxu0
        %v1538 = vadd.f32 %v1479, %v1537
        %1539 = vmatmul.bf16.gmra.mxu0 %v1505
        %v1540 = vpop.f32.mrf.mxu0
        %v1541 = vadd.f32 %v1484, %v1540
        %v1542 = vpop.f32.mrf.mxu0
        %v1543 = vadd.f32 %v1489, %v1542
        %1544 = vdwg.mxu0
        %v1545 = vadd.f32 %v1517, %v1519
        %v1546 = vadd.f32 %v1545, %v1522
        %v1547 = vadd.f32 %v1546, %v1524
        %v1548 = vrot.slane %v1547, 4
        %v1549 = vadd.f32 %v1547, %v1548
        %v1550 = vrot.slane %v1549, 2
        %v1551 = vadd.f32 %v1549, %v1550
        %v1552 = vrot.slane %v1551, 1
        %v1553 = vadd.f32 %v1551, %v1552
        %v1554 = vadd.f32 %v1536, %v1538
        %v1555 = vadd.f32 %v1554, %v1541
        %v1556 = vadd.f32 %v1555, %v1543
        %v1557 = vrot.slane %v1556, 4
        %v1558 = vadd.f32 %v1556, %v1557
        %v1559 = vrot.slane %v1558, 2
        %v1560 = vadd.f32 %v1558, %v1559
        %v1561 = vrot.slane %v1560, 1
        %v1562 = vadd.f32 %v1560, %v1561
        %v1563 = vmul.f32 %v1517, %v1517
        %v1564 = vmul.f32 %v1536, %v1536
        %v1565 = vmul.f32 %v1519, %v1519
        %v1566 = vmul.f32 %v1538, %v1538
        %v1567 = vmul.f32 %v1522, %v1522
        %v1568 = vmul.f32 %v1541, %v1541
        %v1569 = vmul.f32 %v1524, %v1524
        %v1570 = vmul.f32 %v1543, %v1543
        %v1571 = vadd.f32 %v1563, %v1565
        %v1572 = vadd.f32 %v1571, %v1567
        %v1573 = vadd.f32 %v1572, %v1569
        %v1574 = vrot.slane %v1573, 4
        %v1575 = vadd.f32 %v1573, %v1574
        %v1576 = vrot.slane %v1575, 2
        %v1577 = vadd.f32 %v1575, %v1576
        %v1578 = vrot.slane %v1577, 1
        %v1579 = vadd.f32 %v1577, %v1578
        %v1580 = vadd.f32 %v1564, %v1566
        %v1581 = vadd.f32 %v1580, %v1568
        %v1582 = vadd.f32 %v1581, %v1570
        %v1583 = vrot.slane %v1582, 4
        %v1584 = vadd.f32 %v1582, %v1583
        %v1585 = vrot.slane %v1584, 2
        %v1586 = vadd.f32 %v1584, %v1585
        %v1587 = vrot.slane %v1586, 1
        %v1588 = vadd.f32 %v1586, %v1587
        %v1589 = vsel %vm465, %v1553, %v1579
        %v1590 = vsel %vm465, %v1562, %v1588
        %1591 = vrot.lane.b32.xlu0 %v1589, 1
        %v1592 = vpop.permute.xlu0 %1591
        %1593 = vrot.lane.b32.xlu0 %v1590, 1
        %v1594 = vpop.permute.xlu0 %1593
        %v1595 = vsel %vm472, %v1592, %v1594
        %v1596 = vsel %vm472, %v1594, %v1592
        %v1597 = vsel %vm479, 0.0, %v1596
        %v1598 = vsel %vm480, 0.0, %v1595
        %v1599 = vadd.f32 %v1589, %v1597
        %v1600 = vadd.f32 %v1590, %v1598
        %1601 = vrot.lane.b32.xlu0 %v1599, 2
        %v1602 = vpop.permute.xlu0 %1601
        %1603 = vrot.lane.b32.xlu0 %v1600, 2
        %v1604 = vpop.permute.xlu0 %1603
        %v1605 = vsel %vm489, %v1602, %v1604
        %v1606 = vsel %vm489, %v1604, %v1602
        %v1607 = vsel %vm496, 0.0, %v1606
        %v1608 = vsel %vm497, 0.0, %v1605
        %v1609 = vadd.f32 %v1599, %v1607
        %v1610 = vadd.f32 %v1600, %v1608
        %1611 = vrot.lane.b32.xlu0 %v1609, 4
        %v1612 = vpop.permute.xlu0 %1611
        %1613 = vrot.lane.b32.xlu0 %v1610, 4
        %v1614 = vpop.permute.xlu0 %1613
        %v1615 = vsel %vm506, %v1612, %v1614
        %v1616 = vsel %vm506, %v1614, %v1612
        %v1617 = vsel %vm513, 0.0, %v1616
        %v1618 = vsel %vm514, 0.0, %v1615
        %v1619 = vadd.f32 %v1609, %v1617
        %v1620 = vadd.f32 %v1610, %v1618
        %1621 = vrot.lane.b32.xlu0 %v1619, 8
        %v1622 = vpop.permute.xlu0 %1621
        %1623 = vrot.lane.b32.xlu0 %v1620, 8
        %v1624 = vpop.permute.xlu0 %1623
        %v1625 = vsel %vm523, %v1622, %v1624
        %v1626 = vsel %vm523, %v1624, %v1622
        %v1627 = vsel %vm530, 0.0, %v1626
        %v1628 = vsel %vm531, 0.0, %v1625
        %v1629 = vadd.f32 %v1619, %v1627
        %v1630 = vadd.f32 %v1620, %v1628
        %1631 = vrot.lane.b32.xlu0 %v1629, 16
        %v1632 = vpop.permute.xlu0 %1631
        %1633 = vrot.lane.b32.xlu0 %v1630, 16
        %v1634 = vpop.permute.xlu0 %1633
        %v1635 = vsel %vm540, %v1632, %v1634
        %v1636 = vsel %vm540, %v1634, %v1632
        %v1637 = vsel %vm547, 0.0, %v1636
        %v1638 = vsel %vm548, 0.0, %v1635
        %v1639 = vadd.f32 %v1629, %v1637
        %v1640 = vadd.f32 %v1630, %v1638
        %1641 = vrot.lane.b32.xlu0 %v1639, 32
        %v1642 = vpop.permute.xlu0 %1641
        %1643 = vrot.lane.b32.xlu0 %v1640, 32
        %v1644 = vpop.permute.xlu0 %1643
        %v1645 = vsel %vm557, %v1642, %v1644
        %v1646 = vsel %vm557, %v1644, %v1642
        %v1647 = vsel %vm564, 0.0, %v1646
        %v1648 = vsel %vm565, 0.0, %v1645
        %v1649 = vadd.f32 %v1639, %v1647
        %v1650 = vadd.f32 %v1640, %v1648
        %1651 = vrot.lane.b32.xlu0 %v1649, 64
        %v1652 = vpop.permute.xlu0 %1651
        %1653 = vrot.lane.b32.xlu0 %v1650, 64
        %v1654 = vpop.permute.xlu0 %1653
        %v1655 = vsel %vm574, %v1652, %v1654
        %v1656 = vsel %vm574, %v1654, %v1652
        %v1657 = vsel %vm581, 0.0, %v1656
        %v1658 = vsel %vm582, 0.0, %v1655
        %v1659 = vadd.f32 %v1649, %v1657
        %v1660 = vadd.f32 %v1650, %v1658
        %v1661 = vmul.f32 %v1659, %v320
        %v1662 = vmul.f32 %v1660, %v335
        %v1663 = vmul.f32 %v1661, %v1661
        %v1664 = vmul.f32 %v1662, %v1662
        %v1667 = vrot.slane %v1663, 7
        %v1668 = vrot.slane %v1664, 7
        %v1671 = vsub.f32 %v1661, %v1667
        %v1672 = vsub.f32 %v1662, %v1668
        %v1673 = vmax.f32 %v1671, 0.0
        %v1674 = vmax.f32 %v1672, 0.0
        %v1675 = vadd.f32 %v1673, 1e-12
        %v1676 = vadd.f32 %v1674, 1e-12
        %v1677 = vrsqrt.pop %v1675
        %v1678 = vmul.f32 %v1677, %v1675
        %v1679 = vmul.f32 %v1678, %v1677
        %v1680 = vmul.f32 0.5, %v1679
        %v1681 = vsub.f32 1.5, %v1680
        %v1682 = vmul.f32 %v1677, %v1681
        %vm1683 = vweird.f32 %v1675
        %vm1684 = vweird.f32 %v1677
        %vm1685 = vmor %vm1683, %vm1684
        %v1686 = vsel %vm1685, %v1677, %v1682
        %v1687 = vrsqrt.pop %v1676
        %v1688 = vmul.f32 %v1687, %v1676
        %v1689 = vmul.f32 %v1688, %v1687
        %v1690 = vmul.f32 0.5, %v1689
        %v1691 = vsub.f32 1.5, %v1690
        %v1692 = vmul.f32 %v1687, %v1691
        %vm1693 = vweird.f32 %v1676
        %vm1694 = vweird.f32 %v1687
        %vm1695 = vmor %vm1693, %vm1694
        %v1696 = vsel %vm1695, %v1687, %v1692
        %1697 = vset.pattern.permute.xlu0 1
        %1698 = vperm.xlu0 %1697, %v1460
        %v1699 = vpop.permute.xlu0 %1698
        %1701 = vset.pattern.permute.xlu0 1
        %1702 = vperm.xlu0 %1701, %v1461
        %v1703 = vpop.permute.xlu0 %1702
        %1705 = vset.pattern.permute.xlu0 1
        %1706 = vperm.xlu0 %1705, %v1462
        %v1707 = vpop.permute.xlu0 %1706
        %1709 = vset.pattern.permute.xlu0 1
        %1710 = vperm.xlu0 %1709, %v1463
        %v1711 = vpop.permute.xlu0 %1710
        %v1713 = vperm.slane %v1686, 1
        %v1714 = vperm.slane %v1696, 1
        %v1715 = vmul.f32 %v1699, %v1713
        %v1716 = vmul.f32 %v1699, %v1714
        %v1717 = vmul.f32 %v1703, %v1713
        %v1718 = vmul.f32 %v1703, %v1714
        %v1719 = vmul.f32 %v1707, %v1713
        %v1720 = vmul.f32 %v1707, %v1714
        %v1721 = vmul.f32 %v1711, %v1713
        %v1722 = vmul.f32 %v1711, %v1714
        %v1723 = vperm.slane %v1661, 0
        %v1724 = vperm.slane %v1662, 0
        %v1725 = vmul.f32 %v1723, %v1715
        %v1726 = vmul.f32 %v1724, %v1716
        %v1727 = vmul.f32 %v1723, %v1717
        %v1728 = vmul.f32 %v1724, %v1718
        %v1729 = vmul.f32 %v1723, %v1719
        %v1730 = vmul.f32 %v1724, %v1720
        %v1731 = vmul.f32 %v1723, %v1721
        %v1732 = vmul.f32 %v1724, %v1722
        %1733 = vset.pattern.permute.xlu0 2
        %1734 = vperm.xlu0 %1733, %v1460
        %v1735 = vpop.permute.xlu0 %1734
        %1737 = vset.pattern.permute.xlu0 2
        %1738 = vperm.xlu0 %1737, %v1461
        %v1739 = vpop.permute.xlu0 %1738
        %1741 = vset.pattern.permute.xlu0 2
        %1742 = vperm.xlu0 %1741, %v1462
        %v1743 = vpop.permute.xlu0 %1742
        %1745 = vset.pattern.permute.xlu0 2
        %1746 = vperm.xlu0 %1745, %v1463
        %v1747 = vpop.permute.xlu0 %1746
        %v1749 = vsub.f32 %v1735, %v1725
        %v1750 = vsub.f32 %v1735, %v1726
        %v1751 = vsub.f32 %v1739, %v1727
        %v1752 = vsub.f32 %v1739, %v1728
        %v1753 = vsub.f32 %v1743, %v1729
        %v1754 = vsub.f32 %v1743, %v1730
        %v1755 = vsub.f32 %v1747, %v1731
        %v1756 = vsub.f32 %v1747, %v1732
        %v1757 = vmul.f32 %v1517, %v1715
        %v1758 = vmul.f32 %v1536, %v1716
        %v1759 = vmul.f32 %v1519, %v1717
        %v1760 = vmul.f32 %v1538, %v1718
        %v1761 = vmul.f32 %v1522, %v1719
        %v1762 = vmul.f32 %v1541, %v1720
        %v1763 = vmul.f32 %v1524, %v1721
        %v1764 = vmul.f32 %v1543, %v1722
        %v1765 = vadd.f32 %v1757, %v1749
        %v1766 = vadd.f32 %v1758, %v1750
        %v1767 = vadd.f32 %v1759, %v1751
        %v1768 = vadd.f32 %v1760, %v1752
        %v1769 = vadd.f32 %v1761, %v1753
        %v1770 = vadd.f32 %v1762, %v1754
        %v1771 = vadd.f32 %v1763, %v1755
        %v1772 = vadd.f32 %v1764, %v1756
        %1773 = vrot.lane.b32.xlu0 %v1765, 8
        %v1774 = vpop.permute.xlu0 %1773
        %1775 = vrot.lane.b32.xlu0 %v1767, 8
        %v1776 = vpop.permute.xlu0 %1775
        %1777 = vrot.lane.b32.xlu0 %v1769, 8
        %v1778 = vpop.permute.xlu0 %1777
        %1779 = vrot.lane.b32.xlu0 %v1771, 8
        %v1780 = vpop.permute.xlu0 %1779
        %1781 = vrot.lane.b32.xlu0 %v1766, 8
        %v1782 = vpop.permute.xlu0 %1781
        %1783 = vrot.lane.b32.xlu0 %v1768, 8
        %v1784 = vpop.permute.xlu0 %1783
        %1785 = vrot.lane.b32.xlu0 %v1770, 8
        %v1786 = vpop.permute.xlu0 %1785
        %1787 = vrot.lane.b32.xlu0 %v1772, 8
        %v1788 = vpop.permute.xlu0 %1787
        %v1789 = vsel %vm523, %v1774, %v1782
        %v1790 = vsel %vm523, %v1776, %v1784
        %v1791 = vsel %vm523, %v1778, %v1786
        %v1792 = vsel %vm523, %v1780, %v1788
        %v1793 = vsel %vm523, %v1782, %v1774
        %v1794 = vsel %vm523, %v1784, %v1776
        %v1795 = vsel %vm523, %v1786, %v1778
        %v1796 = vsel %vm523, %v1788, %v1780
        %v1797 = vsel %vm530, 0.0, %v1793
        %v1798 = vsel %vm531, 0.0, %v1789
        %v1799 = vsel %vm530, 0.0, %v1794
        %v1800 = vsel %vm531, 0.0, %v1790
        %v1801 = vsel %vm530, 0.0, %v1795
        %v1802 = vsel %vm531, 0.0, %v1791
        %v1803 = vsel %vm530, 0.0, %v1796
        %v1804 = vsel %vm531, 0.0, %v1792
        %v1805 = vpack.c.bf16 %v1798, %v1797
        %v1806 = vpack.c.bf16 %v1800, %v1799
        %v1807 = vpack.c.bf16 %v1802, %v1801
        %v1808 = vpack.c.bf16 %v1804, %v1803
        %1809 = vrot.lane.b32.xlu0 %v1765, 4
        %v1810 = vpop.permute.xlu0 %1809
        %1811 = vrot.lane.b32.xlu0 %v1767, 4
        %v1812 = vpop.permute.xlu0 %1811
        %1813 = vrot.lane.b32.xlu0 %v1769, 4
        %v1814 = vpop.permute.xlu0 %1813
        %1815 = vrot.lane.b32.xlu0 %v1771, 4
        %v1816 = vpop.permute.xlu0 %1815
        %1817 = vrot.lane.b32.xlu0 %v1766, 4
        %v1818 = vpop.permute.xlu0 %1817
        %1819 = vrot.lane.b32.xlu0 %v1768, 4
        %v1820 = vpop.permute.xlu0 %1819
        %1821 = vrot.lane.b32.xlu0 %v1770, 4
        %v1822 = vpop.permute.xlu0 %1821
        %1823 = vrot.lane.b32.xlu0 %v1772, 4
        %v1824 = vpop.permute.xlu0 %1823
        %v1825 = vsel %vm506, %v1810, %v1818
        %v1826 = vsel %vm506, %v1812, %v1820
        %v1827 = vsel %vm506, %v1814, %v1822
        %v1828 = vsel %vm506, %v1816, %v1824
        %v1829 = vsel %vm506, %v1818, %v1810
        %v1830 = vsel %vm506, %v1820, %v1812
        %v1831 = vsel %vm506, %v1822, %v1814
        %v1832 = vsel %vm506, %v1824, %v1816
        %v1833 = vsel %vm513, 0.0, %v1829
        %v1834 = vsel %vm514, 0.0, %v1825
        %v1835 = vsel %vm513, 0.0, %v1830
        %v1836 = vsel %vm514, 0.0, %v1826
        %v1837 = vsel %vm513, 0.0, %v1831
        %v1838 = vsel %vm514, 0.0, %v1827
        %v1839 = vsel %vm513, 0.0, %v1832
        %v1840 = vsel %vm514, 0.0, %v1828
        %v1841 = vpack.c.bf16 %v1834, %v1833
        %v1842 = vpack.c.bf16 %v1836, %v1835
        %v1843 = vpack.c.bf16 %v1838, %v1837
        %v1844 = vpack.c.bf16 %v1840, %v1839
        %v1845 = vpack.c.bf16 %v1766, %v1765
        %v1846 = vpack.c.bf16 %v1768, %v1767
        %v1847 = vpack.c.bf16 %v1770, %v1769
        %v1848 = vpack.c.bf16 %v1772, %v1771
        %v1853 = vunpack.c.l.b16 %v1805
        %v1854 = vunpack.c.h.b16 %v1805
        %v1855 = vunpack.c.l.b16 %v1806
        %v1856 = vunpack.c.h.b16 %v1806
        %v1857 = vunpack.c.l.b16 %v1807
        %v1858 = vunpack.c.h.b16 %v1807
        %v1859 = vunpack.c.l.b16 %v1808
        %v1860 = vunpack.c.h.b16 %v1808
        %v1861 = vpack.c.b16 %v1855, %v1853
        %v1862 = vpack.c.b16 %v1856, %v1854
        %v1863 = vpack.c.b16 %v1859, %v1857
        %v1864 = vpack.c.b16 %v1860, %v1858
        %v1873 = vunpack.c.l.b16 %v1841
        %v1874 = vunpack.c.h.b16 %v1841
        %v1875 = vunpack.c.l.b16 %v1842
        %v1876 = vunpack.c.h.b16 %v1842
        %v1877 = vunpack.c.l.b16 %v1843
        %v1878 = vunpack.c.h.b16 %v1843
        %v1879 = vunpack.c.l.b16 %v1844
        %v1880 = vunpack.c.h.b16 %v1844
        %v1881 = vpack.c.b16 %v1875, %v1873
        %v1882 = vpack.c.b16 %v1876, %v1874
        %v1883 = vpack.c.b16 %v1879, %v1877
        %v1884 = vpack.c.b16 %v1880, %v1878
        %v1893 = vunpack.c.l.b16 %v1845
        %v1894 = vunpack.c.h.b16 %v1845
        %v1895 = vunpack.c.l.b16 %v1846
        %v1896 = vunpack.c.h.b16 %v1846
        %v1897 = vunpack.c.l.b16 %v1847
        %v1898 = vunpack.c.h.b16 %v1847
        %v1899 = vunpack.c.l.b16 %v1848
        %v1900 = vunpack.c.h.b16 %v1848
        %v1901 = vpack.c.b16 %v1895, %v1893
        %v1902 = vpack.c.b16 %v1896, %v1894
        %v1903 = vpack.c.b16 %v1899, %v1897
        %v1904 = vpack.c.b16 %v1900, %v1898
        %s1909 = scalar_lea.vmem %s3, 32
        %v1910 = vld [vmem:[%s1909] sm:$0xf]
        %v1911 = vld [vmem:[%s1909 + $0x4] sm:$0xf]
        %v1912 = vld [vmem:[%s1909 + $0x8] sm:$0xf]
        %v1913 = vld [vmem:[%s1909 + $0xc] sm:$0xf]
        %s1914 = scalar_lea.vmem %s4, 64
        %v1915 = vld [vmem:[%s1914] sm:$0xff]
        %v1916 = vld [vmem:[%s1914 + $0x8] sm:$0xff]
        %v1917 = vld [vmem:[%s1914 + $0x10] sm:$0xff]
        %v1918 = vld [vmem:[%s1914 + $0x18] sm:$0xff]
        %1920 = vset.pattern.permute.xlu0 0
        %1921 = vperm.xlu0 %1920, %v1915
        %v1922 = vpop.permute.xlu0 %1921
        %1925 = vset.pattern.permute.xlu0 0
        %1926 = vperm.xlu0 %1925, %v1916
        %v1927 = vpop.permute.xlu0 %1926
        %1930 = vset.pattern.permute.xlu0 0
        %1931 = vperm.xlu0 %1930, %v1917
        %v1932 = vpop.permute.xlu0 %1931
        %1935 = vset.pattern.permute.xlu0 0
        %1936 = vperm.xlu0 %1935, %v1918
        %v1937 = vpop.permute.xlu0 %1936
        %v1943 = vunpack.c.l.b16 %v1910
        %v1944 = vunpack.c.l.b16 %v1911
        %v1945 = vunpack.c.l.b16 %v1912
        %v1946 = vunpack.c.l.b16 %v1913
        %v1947 = vpack.c.b16 %v1944, %v1943
        %v1948 = vpack.c.b16 %v1946, %v1945
        %1951 = vmatpush.bf16.msra.mxu0 0
        %1952 = vmatpush.bf16.msra.mxu0 0
        %1953 = vmatpush.bf16.msra.mxu0 %v1903
        %1954 = vmatpush.bf16.msra.mxu0 %v1901
        %1955 = vmatpush.bf16.msra.mxu0 %v1883
        %1956 = vmatpush.bf16.msra.mxu0 %v1881
        %1957 = vmatpush.bf16.msra.mxu0 %v1863
        %1958 = vmatpush.bf16.msra.mxu0 %v1861
        %1959 = vmatmul.bf16.gmra.mxu0 %v1947
        %v1960 = vpop.f32.mrf.mxu0
        %v1961 = vadd.f32 %v1922, %v1960
        %v1962 = vpop.f32.mrf.mxu0
        %v1963 = vadd.f32 %v1927, %v1962
        %1964 = vmatmul.bf16.gmra.mxu0 %v1948
        %v1965 = vpop.f32.mrf.mxu0
        %v1966 = vadd.f32 %v1932, %v1965
        %v1967 = vpop.f32.mrf.mxu0
        %v1968 = vadd.f32 %v1937, %v1967
        %1969 = vdwg.mxu0
        %1970 = vmatpush.bf16.msra.mxu0 0
        %1971 = vmatpush.bf16.msra.mxu0 0
        %1972 = vmatpush.bf16.msra.mxu0 %v1904
        %1973 = vmatpush.bf16.msra.mxu0 %v1902
        %1974 = vmatpush.bf16.msra.mxu0 %v1884
        %1975 = vmatpush.bf16.msra.mxu0 %v1882
        %1976 = vmatpush.bf16.msra.mxu0 %v1864
        %1977 = vmatpush.bf16.msra.mxu0 %v1862
        %1978 = vmatmul.bf16.gmra.mxu0 %v1947
        %v1979 = vpop.f32.mrf.mxu0
        %v1980 = vadd.f32 %v1922, %v1979
        %v1981 = vpop.f32.mrf.mxu0
        %v1982 = vadd.f32 %v1927, %v1981
        %1983 = vmatmul.bf16.gmra.mxu0 %v1948
        %v1984 = vpop.f32.mrf.mxu0
        %v1985 = vadd.f32 %v1932, %v1984
        %v1986 = vpop.f32.mrf.mxu0
        %v1987 = vadd.f32 %v1937, %v1986
        %1988 = vdwg.mxu0
        %v1989 = vadd.f32 %v1961, %v1451
        %v1990 = vadd.f32 %v1980, %v1452
        %v1991 = vadd.f32 %v1963, %v1453
        %v1992 = vadd.f32 %v1982, %v1454
        %v1993 = vadd.f32 %v1455, %v1966
        %v1994 = vadd.f32 %v1456, %v1985
        %v1995 = vadd.f32 %v1457, %v1968
        %v1996 = vadd.f32 %v1458, %v1987
        %1997 = vst [vmem:[%s279] sm:$0xff] %v1989
        %1998 = vst [vmem:[%s279 + $0x8] sm:$0xff] %v1990
        %1999 = vst [vmem:[%s279 + $0x10] sm:$0xff] %v1991
        %2000 = vst [vmem:[%s279 + $0x18] sm:$0xff] %v1992
        %2001 = vst [vmem:[%s286] sm:$0xff] %v1993
        %2002 = vst [vmem:[%s286 + $0x8] sm:$0xff] %v1994
        %2003 = vst [vmem:[%s286 + $0x10] sm:$0xff] %v1995
        %2004 = vst [vmem:[%s286 + $0x18] sm:$0xff] %v1996
        %s2005 = sand.u32 %s142, 1
        %s2006 = scalar_lea.sflag [#allocation4], %s2005
        %s2007 = sand.u32 %s142, 1
        %s2008 = smul.addr %s2007, 32
        %s2009 = scalar_lea.vmem [#allocation3], %s2008
        %s2010 = sand.u32 %s168, 1
        %s2011 = scalar_lea.sflag [#allocation6], %s2010
        %s2012 = sand.u32 %s168, 1
        %s2013 = smul.addr %s2012, 32
        %s2014 = scalar_lea.vmem [#allocation5], %s2013
        // Predicated region
        $region64: #{tpu_custom_call.1} parent=58 // pred_check
          %p2015 = pneg %p152
        $region65: #{tpu_custom_call.1} parent=58 // pred_check_branch
          %2017 = sbr.rel (%p2015) target = $region67
        $region66: #{tpu_custom_call.1} parent=58 // pred_region
          %s2018 = smul.u32 2, %s24
          %2020 = vsyncadd %s2006, 0
          %s2021 = smul.addr %s2018, 8
          %s2022 = scalar_lea.hbm %s5, %s2021
          %s2023 = sshll.u32 %s2009, 4
          %s2024 = int_to_ptr.vmem [resolvable:$true] %s2023
          %s2025 = sshll.u32 %s2022, 4
          %s2026 = int_to_ptr.hbm [resolvable:$true] %s2025
          %2031 = dma.vmem_to_hbm [thread:$0]  %s2024, 512, %s2026, %s2006, 256, 512, 16
        $region67: #{tpu_custom_call.1} parent=58 // pred_fallthru
          _
        // Predicated region
        $region68: #{tpu_custom_call.1} parent=58 // pred_check
          %p2032 = pneg %p178
        $region69: #{tpu_custom_call.1} parent=58 // pred_check_branch
          %2034 = sbr.rel (%p2032) target = $region71
        $region70: #{tpu_custom_call.1} parent=58 // pred_region
          %s2035 = smul.u32 2, %s24
          %2037 = vsyncadd %s2011, 0
          %s2038 = smul.addr %s2035, 8
          %s2039 = scalar_lea.hbm %s6, %s2038
          %s2040 = sshll.u32 %s2014, 4
          %s2041 = int_to_ptr.vmem [resolvable:$true] %s2040
          %s2042 = sshll.u32 %s2039, 4
          %s2043 = int_to_ptr.hbm [resolvable:$true] %s2042
          %2048 = dma.vmem_to_hbm [thread:$0]  %s2041, 512, %s2043, %s2011, 256, 512, 16
        $region71: #{tpu_custom_call.1} parent=58 // pred_fallthru
          _
      $region59: #{tpu_custom_call.1} parent=5 // pred_fallthru
        _
      %p2049 = scmp.le.s32.totalorder 2, %s19
      // Predicated region
      $region72: #{tpu_custom_call.1} parent=5 // pred_check
        %p2050 = pneg %p2049
      $region73: #{tpu_custom_call.1} parent=5 // pred_check_branch
        %2052 = sbr.rel (%p2050) target = $region75
      $region74: #{tpu_custom_call.1} parent=5 // pred_region
        %s2053 = ssub.s32 %s19, 2
        // Predicated region
        $region76: #{tpu_custom_call.1} parent=74 // pred_check
          %p2054 = pneg %p158
        $region77: #{tpu_custom_call.1} parent=74 // pred_check_branch
          %2056 = sbr.rel (%p2054) target = $region79
        $region78: #{tpu_custom_call.1} parent=74 // pred_region
          %s2057 = sand.u32 %s143, 1
          %s2058 = scalar_lea.sflag [#allocation4], %s2057
          %s2059 = sand.u32 %s143, 1
          %s2060 = smul.addr %s2059, 32
          %s2061 = scalar_lea.vmem [#allocation3], %s2060
          %2063 = dma.done %s2058, 512
        $region79: #{tpu_custom_call.1} parent=74 // pred_fallthru
          _
        // Predicated region
        $region80: #{tpu_custom_call.1} parent=74 // pred_check
          %p2064 = pneg %p184
        $region81: #{tpu_custom_call.1} parent=74 // pred_check_branch
          %2066 = sbr.rel (%p2064) target = $region83
        $region82: #{tpu_custom_call.1} parent=74 // pred_region
          %s2067 = sand.u32 %s169, 1
          %s2068 = scalar_lea.sflag [#allocation6], %s2067
          %s2069 = sand.u32 %s169, 1
          %s2070 = smul.addr %s2069, 32
          %s2071 = scalar_lea.vmem [#allocation5], %s2070
          %2073 = dma.done %s2068, 512
        $region83: #{tpu_custom_call.1} parent=74 // pred_fallthru
          _
      $region75: #{tpu_custom_call.1} parent=5 // pred_fallthru
        _
    $region6: #{tpu_custom_call.1} parent=1 // loop_footer
      %s23 = sadd.s32 1, %s19
    $region7: #{tpu_custom_call.1} parent=1 // loop_footer_branch
      %18 = sbr.rel target = $region3
    $region8: #{tpu_custom_call.1} parent=1 // loop_exit
      _
    %2074 = vsyncpa [#allocation4], 1
    %s2075 = scalar_lea.sflag [#allocation4], 1
    %2076 = vsyncpa %s2075, 1
    %2077 = vsyncpa [#allocation6], 1
    %s2078 = scalar_lea.sflag [#allocation6], 1
    %2079 = vsyncpa %s2078, 1

</llo_original>
